<compile_context>
chip_gen: v6e
topology: v6e:2x2x1
jax: 0.10.0
libtpu: 0.0.40
codegen_flags: <defaults>
</compile_context>

<pallas_src>
import math
import functools

import jax
import jax.numpy as jnp
from jax import lax
from jax.experimental import pallas as pl
from jax.experimental.pallas import tpu as pltpu


# ----------------------------------------------------------------------------
# Fused kernel: projections + per-head attention + output projection, per batch
# ----------------------------------------------------------------------------
def _fused_attention_kernel(q_ref, k_ref, v_ref,
                            wq_ref, bq_ref, wk_ref, bk_ref, wv_ref, bv_ref,
                            wo_ref, bo_ref,
                            o_ref,
                            qp_ref, kp_ref, vp_ref, acc_ref,
                            *, num_heads, scale):
    f32 = jnp.float32
    bf16 = jnp.bfloat16

    q = q_ref[0]   # (Nq, E) bf16
    k = k_ref[0]   # (Nk, E) bf16
    v = v_ref[0]   # (Nk, E) bf16

    # Fused projections: bf16 MXU, f32 accumulation, f32 bias add.
    # Softmax scale is folded into Q here (cheaper than scaling (Nq, Nk) scores).
    qp_ref[...] = (jnp.dot(q, wq_ref[...], preferred_element_type=f32)
                   + bq_ref[...]) * scale
    kp_ref[...] = jnp.dot(k, wk_ref[...], preferred_element_type=f32) + bk_ref[...]
    vp_ref[...] = jnp.dot(v, wv_ref[...], preferred_element_type=f32) + bv_ref[...]

    d = qp_ref.shape[-1] // num_heads

    # Static (unrolled) head loop; heads are contiguous lane slices of the
    # projected activations, so no head-split transpose is ever materialized.
    for h in range(num_heads):
        sl = slice(h * d, (h + 1) * d)
        qh = qp_ref[:, sl].astype(bf16)   # (Nq, d), already scaled
        kh = kp_ref[:, sl].astype(bf16)   # (Nk, d)
        vh = vp_ref[:, sl].astype(bf16)   # (Nk, d)

        # scores = qh @ kh^T without an explicit transpose of K (contract last dims).
        s = lax.dot_general(qh, kh, (((1,), (1,)), ((), ())),
                            preferred_element_type=f32)          # (Nq, Nk)
        s = s - jnp.max(s, axis=-1, keepdims=True)
        p = jnp.exp(s)
        p = p * pl.reciprocal(jnp.sum(p, axis=-1, keepdims=True), approx=True)

        acc_ref[:, sl] = jnp.dot(p.astype(bf16), vh,
                                 preferred_element_type=f32)      # (Nq, d)

    # Output projection; block written directly in final (B, Nq, E) layout.
    out = jnp.dot(acc_ref[...].astype(bf16), wo_ref[...],
                  preferred_element_type=f32) + bo_ref[...]
    o_ref[0] = out.astype(o_ref.dtype)


# ----------------------------------------------------------------------------
# Module wrapper (mirrors SAM Attention.forward)
# ----------------------------------------------------------------------------
def attention_forward(params, q, k, v, num_heads):
    B, Nq, E = q.shape
    Nk = k.shape[1]
    D = params["wq"].shape[1]              # internal_dim
    assert D % num_heads == 0
    d = D // num_heads
    scale = 1.0 / math.sqrt(d)

    bf16 = jnp.bfloat16
    f32 = jnp.float32
    # bf16 activations/weights for the MXU + halved DMA bytes; biases stay f32
    # (added after f32 accumulation).
    q_b, k_b, v_b = q.astype(bf16), k.astype(bf16), v.astype(bf16)
    wq, wk, wv, wo = (params[n].astype(bf16) for n in ("wq", "wk", "wv", "wo"))
    bq = params["bq"].reshape(1, D).astype(f32)
    bk = params["bk"].reshape(1, D).astype(f32)
    bv = params["bv"].reshape(1, D).astype(f32)
    bo = params["bo"].reshape(1, E).astype(f32)

    kernel = functools.partial(_fused_attention_kernel,
                               num_heads=num_heads, scale=scale)

    resident = lambda b: (0, 0)            # weights/biases: same block every step
    return pl.pallas_call(
        kernel,
        out_shape=jax.ShapeDtypeStruct((B, Nq, E), f32),
        grid_spec=pltpu.PrefetchScalarGridSpec(
            num_scalar_prefetch=0,
            grid=(B,),
            in_specs=[
                pl.BlockSpec((1, Nq, E), lambda b: (b, 0, 0)),   # q
                pl.BlockSpec((1, Nk, E), lambda b: (b, 0, 0)),   # k
                pl.BlockSpec((1, Nk, E), lambda b: (b, 0, 0)),   # v
                pl.BlockSpec((E, D), resident),                  # wq
                pl.BlockSpec((1, D), resident),                  # bq
                pl.BlockSpec((E, D), resident),                  # wk
                pl.BlockSpec((1, D), resident),                  # bk
                pl.BlockSpec((E, D), resident),                  # wv
                pl.BlockSpec((1, D), resident),                  # bv
                pl.BlockSpec((D, E), resident),                  # wo
                pl.BlockSpec((1, E), resident),                  # bo
            ],
            out_specs=pl.BlockSpec((1, Nq, E), lambda b: (b, 0, 0)),
            scratch_shapes=[
                pltpu.VMEM((Nq, D), f32),   # scaled Q projection
                pltpu.VMEM((Nk, D), f32),   # K projection
                pltpu.VMEM((Nk, D), f32),   # V projection
                pltpu.VMEM((Nq, D), f32),   # per-head attention outputs
            ],
        ),
        compiler_params=pltpu.CompilerParams(
            dimension_semantics=("parallel",),   # megacore sharding over batch
        ),
    )(q_b, k_b, v_b, wq, bq, wk, bk, wv, bv, wo, bo)


def init_attention_params(key, embedding_dim, internal_dim):
    ks = jax.random.split(key, 8)

    def lin(kw, kb, cin, cout):
        bound = 1.0 / math.sqrt(cin)
        w = jax.random.uniform(kw, (cin, cout), jnp.float32, -bound, bound)
        b = jax.random.uniform(kb, (cout,), jnp.float32, -bound, bound)
        return w, b

    wq, bq = lin(ks[0], ks[1], embedding_dim, internal_dim)
    wk, bk = lin(ks[2], ks[3], embedding_dim, internal_dim)
    wv, bv = lin(ks[4], ks[5], embedding_dim, internal_dim)
    wo, bo = lin(ks[6], ks[7], internal_dim, embedding_dim)
    return dict(wq=wq, bq=bq, wk=wk, bk=bk, wv=wv, bv=bv, wo=wo, bo=bo)


# Pure-JAX f32 reference (same math as the PyTorch module).
def attention_ref(params, q, k, v, num_heads):
    B, Nq, E = q.shape
    Nk = k.shape[1]
    D = params["wq"].shape[1]
    d = D // num_heads
    qp = q @ params["wq"] + params["bq"]
    kp = k @ params["wk"] + params["bk"]
    vp = v @ params["wv"] + params["bv"]
    qh = qp.reshape(B, Nq, num_heads, d).transpose(0, 2, 1, 3)
    kh = kp.reshape(B, Nk, num_heads, d).transpose(0, 2, 1, 3)
    vh = vp.reshape(B, Nk, num_heads, d).transpose(0, 2, 1, 3)
    attn = jnp.einsum("bhqd,bhkd->bhqk", qh, kh) / math.sqrt(d)
    attn = jax.nn.softmax(attn, axis=-1)
    o = jnp.einsum("bhqk,bhkd->bhqd", attn, vh)
    o = o.transpose(0, 2, 1, 3).reshape(B, Nq, D)
    return o @ params["wo"] + params["bo"]


if __name__ == "__main__":
    # Small, module-consistent shapes
    B, Nq, Nk = 2, 8, 8
    embedding_dim, num_heads, downsample_rate = 32, 4, 1
    internal_dim = embedding_dim // downsample_rate

    key = jax.random.PRNGKey(0)
    kp, kq, kk, kv = jax.random.split(key, 4)
    params = init_attention_params(kp, embedding_dim, internal_dim)
    q = jax.random.normal(kq, (B, Nq, embedding_dim), jnp.float32)
    k = jax.random.normal(kk, (B, Nk, embedding_dim), jnp.float32)
    v = jax.random.normal(kv, (B, Nk, embedding_dim), jnp.float32)

    out = attention_forward(params, q, k, v, num_heads)
    out = jax.block_until_ready(out)

    ref = attention_ref(params, q, k, v, num_heads)
    assert out.shape == (B, Nq, embedding_dim)
    # Loose tolerance: kernel uses bf16 MXU operands (f32 accumulation) and an
    # approximate-reciprocal softmax denominator; reference is pure f32.
    assert jnp.allclose(out, ref, atol=2e-2, rtol=2e-2)

    print("KERNEL_OK")
</pallas_src>

<mosaic_0001>
module attributes {stable_mosaic.version = 11 : i64} {
  func.func @_fused_attention_kernel(%arg0: i32, %arg1: memref<1x8x32xbf16, #tpu.memory_space<vmem>>, %arg2: memref<1x8x32xbf16, #tpu.memory_space<vmem>>, %arg3: memref<1x8x32xbf16, #tpu.memory_space<vmem>>, %arg4: memref<32x32xbf16, #tpu.memory_space<vmem>>, %arg5: memref<1x32xf32, #tpu.memory_space<vmem>>, %arg6: memref<32x32xbf16, #tpu.memory_space<vmem>>, %arg7: memref<1x32xf32, #tpu.memory_space<vmem>>, %arg8: memref<32x32xbf16, #tpu.memory_space<vmem>>, %arg9: memref<1x32xf32, #tpu.memory_space<vmem>>, %arg10: memref<32x32xbf16, #tpu.memory_space<vmem>>, %arg11: memref<1x32xf32, #tpu.memory_space<vmem>>, %arg12: memref<1x8x32xf32, #tpu.memory_space<vmem>>, %arg13: memref<8x32xf32, #tpu.memory_space<vmem>>, %arg14: memref<8x32xf32, #tpu.memory_space<vmem>>, %arg15: memref<8x32xf32, #tpu.memory_space<vmem>>, %arg16: memref<8x32xf32, #tpu.memory_space<vmem>>) attributes {dimension_semantics = [#tpu.dimension_semantics<parallel>], iteration_bounds = array<i64: 2>, scalar_prefetch = 0 : i64, scratch_operands = 4 : i64, tpu.core_type = #tpu.core_type<tc>, window_params = [{transform_indices = @transform_0, window_bounds = array<i64: 1, 8, 32>}, {transform_indices = @transform_1, window_bounds = array<i64: 1, 8, 32>}, {transform_indices = @transform_2, window_bounds = array<i64: 1, 8, 32>}, {pipeline_mode = #tpu.pipeline_mode<synchronous>, transform_indices = @transform_3, window_bounds = array<i64: 32, 32>}, {pipeline_mode = #tpu.pipeline_mode<synchronous>, transform_indices = @transform_4, window_bounds = array<i64: 1, 32>}, {pipeline_mode = #tpu.pipeline_mode<synchronous>, transform_indices = @transform_5, window_bounds = array<i64: 32, 32>}, {pipeline_mode = #tpu.pipeline_mode<synchronous>, transform_indices = @transform_6, window_bounds = array<i64: 1, 32>}, {pipeline_mode = #tpu.pipeline_mode<synchronous>, transform_indices = @transform_7, window_bounds = array<i64: 32, 32>}, {pipeline_mode = #tpu.pipeline_mode<synchronous>, transform_indices = @transform_8, window_bounds = array<i64: 1, 32>}, {pipeline_mode = #tpu.pipeline_mode<synchronous>, transform_indices = @transform_9, window_bounds = array<i64: 32, 32>}, {pipeline_mode = #tpu.pipeline_mode<synchronous>, transform_indices = @transform_10, window_bounds = array<i64: 1, 32>}, {transform_indices = @transform_11, window_bounds = array<i64: 1, 8, 32>}]} {
    %c0 = arith.constant 0 : index
    %c0_0 = arith.constant 0 : index
    %c0_1 = arith.constant 0 : index
    %0 = vector.load %arg1[%c0, %c0_0, %c0_1] : memref<1x8x32xbf16, #tpu.memory_space<vmem>>, vector<1x8x32xbf16>
    %1 = vector.shape_cast %0 : vector<1x8x32xbf16> to vector<8x32xbf16>
    %c0_2 = arith.constant 0 : index
    %c0_3 = arith.constant 0 : index
    %c0_4 = arith.constant 0 : index
    %2 = vector.load %arg2[%c0_2, %c0_3, %c0_4] : memref<1x8x32xbf16, #tpu.memory_space<vmem>>, vector<1x8x32xbf16>
    %3 = vector.shape_cast %2 : vector<1x8x32xbf16> to vector<8x32xbf16>
    %c0_5 = arith.constant 0 : index
    %c0_6 = arith.constant 0 : index
    %c0_7 = arith.constant 0 : index
    %4 = vector.load %arg3[%c0_5, %c0_6, %c0_7] : memref<1x8x32xbf16, #tpu.memory_space<vmem>>, vector<1x8x32xbf16>
    %5 = vector.shape_cast %4 : vector<1x8x32xbf16> to vector<8x32xbf16>
    %c0_8 = arith.constant 0 : index
    %c0_9 = arith.constant 0 : index
    %6 = vector.load %arg4[%c0_8, %c0_9] : memref<32x32xbf16, #tpu.memory_space<vmem>>, vector<32x32xbf16>
    %cst = arith.constant dense<0.000000e+00> : vector<8x32xf32>
    %7 = tpu.matmul %1, %6, %cst {dimension_numbers = #tpu.dot_dimension_numbers<[1], [0], [0], [1], [0, 0, 1, 1], [], []>} : vector<8x32xbf16>, vector<32x32xbf16>, vector<8x32xf32> -> vector<8x32xf32>
    %c0_10 = arith.constant 0 : index
    %c0_11 = arith.constant 0 : index
    %8 = vector.load %arg5[%c0_10, %c0_11] : memref<1x32xf32, #tpu.memory_space<vmem>>, vector<1x32xf32>
    %9 = vector.broadcast %8 : vector<1x32xf32> to vector<8x32xf32>
    %10 = arith.addf %7, %9 : vector<8x32xf32>
    %cst_12 = arith.constant 0.353553385 : f32
    %11 = vector.broadcast %cst_12 : f32 to vector<8x32xf32>
    %12 = arith.mulf %10, %11 : vector<8x32xf32>
    %c0_13 = arith.constant 0 : index
    %c0_14 = arith.constant 0 : index
    %13 = vector.load %arg13[%c0_13, %c0_14] : memref<8x32xf32, #tpu.memory_space<vmem>>, vector<8x32xf32>
    tpu.vector_store %arg13[%c0_13, %c0_14], %12 {strides = array<i32>} : memref<8x32xf32, #tpu.memory_space<vmem>>, vector<8x32xf32>,
    %c0_15 = arith.constant 0 : index
    %c0_16 = arith.constant 0 : index
    %14 = vector.load %arg6[%c0_15, %c0_16] : memref<32x32xbf16, #tpu.memory_space<vmem>>, vector<32x32xbf16>
    %cst_17 = arith.constant dense<0.000000e+00> : vector<8x32xf32>
    %15 = tpu.matmul %3, %14, %cst_17 {dimension_numbers = #tpu.dot_dimension_numbers<[1], [0], [0], [1], [0, 0, 1, 1], [], []>} : vector<8x32xbf16>, vector<32x32xbf16>, vector<8x32xf32> -> vector<8x32xf32>
    %c0_18 = arith.constant 0 : index
    %c0_19 = arith.constant 0 : index
    %16 = vector.load %arg7[%c0_18, %c0_19] : memref<1x32xf32, #tpu.memory_space<vmem>>, vector<1x32xf32>
    %17 = vector.broadcast %16 : vector<1x32xf32> to vector<8x32xf32>
    %18 = arith.addf %15, %17 : vector<8x32xf32>
    %c0_20 = arith.constant 0 : index
    %c0_21 = arith.constant 0 : index
    %19 = vector.load %arg14[%c0_20, %c0_21] : memref<8x32xf32, #tpu.memory_space<vmem>>, vector<8x32xf32>
    tpu.vector_store %arg14[%c0_20, %c0_21], %18 {strides = array<i32>} : memref<8x32xf32, #tpu.memory_space<vmem>>, vector<8x32xf32>,
    %c0_22 = arith.constant 0 : index
    %c0_23 = arith.constant 0 : index
    %20 = vector.load %arg8[%c0_22, %c0_23] : memref<32x32xbf16, #tpu.memory_space<vmem>>, vector<32x32xbf16>
    %cst_24 = arith.constant dense<0.000000e+00> : vector<8x32xf32>
    %21 = tpu.matmul %5, %20, %cst_24 {dimension_numbers = #tpu.dot_dimension_numbers<[1], [0], [0], [1], [0, 0, 1, 1], [], []>} : vector<8x32xbf16>, vector<32x32xbf16>, vector<8x32xf32> -> vector<8x32xf32>
    %c0_25 = arith.constant 0 : index
    %c0_26 = arith.constant 0 : index
    %22 = vector.load %arg9[%c0_25, %c0_26] : memref<1x32xf32, #tpu.memory_space<vmem>>, vector<1x32xf32>
    %23 = vector.broadcast %22 : vector<1x32xf32> to vector<8x32xf32>
    %24 = arith.addf %21, %23 : vector<8x32xf32>
    %c0_27 = arith.constant 0 : index
    %c0_28 = arith.constant 0 : index
    %25 = vector.load %arg15[%c0_27, %c0_28] : memref<8x32xf32, #tpu.memory_space<vmem>>, vector<8x32xf32>
    tpu.vector_store %arg15[%c0_27, %c0_28], %24 {strides = array<i32>} : memref<8x32xf32, #tpu.memory_space<vmem>>, vector<8x32xf32>,
    %c0_29 = arith.constant 0 : index
    %c0_30 = arith.constant 0 : index
    %26 = vector.load %arg13[%c0_29, %c0_30] : memref<8x32xf32, #tpu.memory_space<vmem>>, vector<8x8xf32>
    %27 = arith.truncf %26 : vector<8x8xf32> to vector<8x8xbf16>
    %c0_31 = arith.constant 0 : index
    %c0_32 = arith.constant 0 : index
    %28 = vector.load %arg14[%c0_31, %c0_32] : memref<8x32xf32, #tpu.memory_space<vmem>>, vector<8x8xf32>
    %29 = arith.truncf %28 : vector<8x8xf32> to vector<8x8xbf16>
    %c0_33 = arith.constant 0 : index
    %c0_34 = arith.constant 0 : index
    %30 = vector.load %arg15[%c0_33, %c0_34] : memref<8x32xf32, #tpu.memory_space<vmem>>, vector<8x8xf32>
    %31 = arith.truncf %30 : vector<8x8xf32> to vector<8x8xbf16>
    %cst_35 = arith.constant dense<0.000000e+00> : vector<8x8xf32>
    %32 = tpu.matmul %27, %29, %cst_35 {dimension_numbers = #tpu.dot_dimension_numbers<[1], [1], [0], [0], [0, 0, 1, 0], [], []>} : vector<8x8xbf16>, vector<8x8xbf16>, vector<8x8xf32> -> vector<8x8xf32>
    %cst_36 = arith.constant dense<0xFF800000> : vector<8xf32>
    %33 = vector.multi_reduction <maximumf>, %32, %cst_36 [1] : vector<8x8xf32> to vector<8xf32>
    %34 = vector.shape_cast %33 : vector<8xf32> to vector<8x1xf32>
    %35 = vector.broadcast %34 : vector<8x1xf32> to vector<8x8xf32>
    %36 = arith.subf %32, %35 : vector<8x8xf32>
    %37 = math.exp %36 : vector<8x8xf32>
    %cst_37 = arith.constant dense<0.000000e+00> : vector<8xf32>
    %38 = vector.multi_reduction <add>, %37, %cst_37 [1] : vector<8x8xf32> to vector<8xf32>
    %39 = vector.shape_cast %38 : vector<8xf32> to vector<8x1xf32>
    %40 = tpu.reciprocal %39 {approx = true} : vector<8x1xf32> -> vector<8x1xf32>
    %41 = vector.broadcast %40 : vector<8x1xf32> to vector<8x8xf32>
    %42 = arith.mulf %37, %41 : vector<8x8xf32>
    %43 = arith.truncf %42 : vector<8x8xf32> to vector<8x8xbf16>
    %cst_38 = arith.constant dense<0.000000e+00> : vector<8x8xf32>
    %44 = tpu.matmul %43, %31, %cst_38 {dimension_numbers = #tpu.dot_dimension_numbers<[1], [0], [0], [1], [0, 0, 1, 1], [], []>} : vector<8x8xbf16>, vector<8x8xbf16>, vector<8x8xf32> -> vector<8x8xf32>
    %c0_39 = arith.constant 0 : index
    %c0_40 = arith.constant 0 : index
    %45 = vector.load %arg16[%c0_39, %c0_40] : memref<8x32xf32, #tpu.memory_space<vmem>>, vector<8x8xf32>
    tpu.vector_store %arg16[%c0_39, %c0_40], %44 {strides = array<i32>} : memref<8x32xf32, #tpu.memory_space<vmem>>, vector<8x8xf32>,
    %c0_41 = arith.constant 0 : index
    %c8 = arith.constant 8 : index
    %46 = vector.load %arg13[%c0_41, %c8] : memref<8x32xf32, #tpu.memory_space<vmem>>, vector<8x8xf32>
    %47 = arith.truncf %46 : vector<8x8xf32> to vector<8x8xbf16>
    %c0_42 = arith.constant 0 : index
    %c8_43 = arith.constant 8 : index
    %48 = vector.load %arg14[%c0_42, %c8_43] : memref<8x32xf32, #tpu.memory_space<vmem>>, vector<8x8xf32>
    %49 = arith.truncf %48 : vector<8x8xf32> to vector<8x8xbf16>
    %c0_44 = arith.constant 0 : index
    %c8_45 = arith.constant 8 : index
    %50 = vector.load %arg15[%c0_44, %c8_45] : memref<8x32xf32, #tpu.memory_space<vmem>>, vector<8x8xf32>
    %51 = arith.truncf %50 : vector<8x8xf32> to vector<8x8xbf16>
    %cst_46 = arith.constant dense<0.000000e+00> : vector<8x8xf32>
    %52 = tpu.matmul %47, %49, %cst_46 {dimension_numbers = #tpu.dot_dimension_numbers<[1], [1], [0], [0], [0, 0, 1, 0], [], []>} : vector<8x8xbf16>, vector<8x8xbf16>, vector<8x8xf32> -> vector<8x8xf32>
    %cst_47 = arith.constant dense<0xFF800000> : vector<8xf32>
    %53 = vector.multi_reduction <maximumf>, %52, %cst_47 [1] : vector<8x8xf32> to vector<8xf32>
    %54 = vector.shape_cast %53 : vector<8xf32> to vector<8x1xf32>
    %55 = vector.broadcast %54 : vector<8x1xf32> to vector<8x8xf32>
    %56 = arith.subf %52, %55 : vector<8x8xf32>
    %57 = math.exp %56 : vector<8x8xf32>
    %cst_48 = arith.constant dense<0.000000e+00> : vector<8xf32>
    %58 = vector.multi_reduction <add>, %57, %cst_48 [1] : vector<8x8xf32> to vector<8xf32>
    %59 = vector.shape_cast %58 : vector<8xf32> to vector<8x1xf32>
    %60 = tpu.reciprocal %59 {approx = true} : vector<8x1xf32> -> vector<8x1xf32>
    %61 = vector.broadcast %60 : vector<8x1xf32> to vector<8x8xf32>
    %62 = arith.mulf %57, %61 : vector<8x8xf32>
    %63 = arith.truncf %62 : vector<8x8xf32> to vector<8x8xbf16>
    %cst_49 = arith.constant dense<0.000000e+00> : vector<8x8xf32>
    %64 = tpu.matmul %63, %51, %cst_49 {dimension_numbers = #tpu.dot_dimension_numbers<[1], [0], [0], [1], [0, 0, 1, 1], [], []>} : vector<8x8xbf16>, vector<8x8xbf16>, vector<8x8xf32> -> vector<8x8xf32>
    %c0_50 = arith.constant 0 : index
    %c8_51 = arith.constant 8 : index
    %65 = vector.load %arg16[%c0_50, %c8_51] : memref<8x32xf32, #tpu.memory_space<vmem>>, vector<8x8xf32>
    tpu.vector_store %arg16[%c0_50, %c8_51], %64 {strides = array<i32>} : memref<8x32xf32, #tpu.memory_space<vmem>>, vector<8x8xf32>,
    %c0_52 = arith.constant 0 : index
    %c16 = arith.constant 16 : index
    %66 = vector.load %arg13[%c0_52, %c16] : memref<8x32xf32, #tpu.memory_space<vmem>>, vector<8x8xf32>
    %67 = arith.truncf %66 : vector<8x8xf32> to vector<8x8xbf16>
    %c0_53 = arith.constant 0 : index
    %c16_54 = arith.constant 16 : index
    %68 = vector.load %arg14[%c0_53, %c16_54] : memref<8x32xf32, #tpu.memory_space<vmem>>, vector<8x8xf32>
    %69 = arith.truncf %68 : vector<8x8xf32> to vector<8x8xbf16>
    %c0_55 = arith.constant 0 : index
    %c16_56 = arith.constant 16 : index
    %70 = vector.load %arg15[%c0_55, %c16_56] : memref<8x32xf32, #tpu.memory_space<vmem>>, vector<8x8xf32>
    %71 = arith.truncf %70 : vector<8x8xf32> to vector<8x8xbf16>
    %cst_57 = arith.constant dense<0.000000e+00> : vector<8x8xf32>
    %72 = tpu.matmul %67, %69, %cst_57 {dimension_numbers = #tpu.dot_dimension_numbers<[1], [1], [0], [0], [0, 0, 1, 0], [], []>} : vector<8x8xbf16>, vector<8x8xbf16>, vector<8x8xf32> -> vector<8x8xf32>
    %cst_58 = arith.constant dense<0xFF800000> : vector<8xf32>
    %73 = vector.multi_reduction <maximumf>, %72, %cst_58 [1] : vector<8x8xf32> to vector<8xf32>
    %74 = vector.shape_cast %73 : vector<8xf32> to vector<8x1xf32>
    %75 = vector.broadcast %74 : vector<8x1xf32> to vector<8x8xf32>
    %76 = arith.subf %72, %75 : vector<8x8xf32>
    %77 = math.exp %76 : vector<8x8xf32>
    %cst_59 = arith.constant dense<0.000000e+00> : vector<8xf32>
    %78 = vector.multi_reduction <add>, %77, %cst_59 [1] : vector<8x8xf32> to vector<8xf32>
    %79 = vector.shape_cast %78 : vector<8xf32> to vector<8x1xf32>
    %80 = tpu.reciprocal %79 {approx = true} : vector<8x1xf32> -> vector<8x1xf32>
    %81 = vector.broadcast %80 : vector<8x1xf32> to vector<8x8xf32>
    %82 = arith.mulf %77, %81 : vector<8x8xf32>
    %83 = arith.truncf %82 : vector<8x8xf32> to vector<8x8xbf16>
    %cst_60 = arith.constant dense<0.000000e+00> : vector<8x8xf32>
    %84 = tpu.matmul %83, %71, %cst_60 {dimension_numbers = #tpu.dot_dimension_numbers<[1], [0], [0], [1], [0, 0, 1, 1], [], []>} : vector<8x8xbf16>, vector<8x8xbf16>, vector<8x8xf32> -> vector<8x8xf32>
    %c0_61 = arith.constant 0 : index
    %c16_62 = arith.constant 16 : index
    %85 = vector.load %arg16[%c0_61, %c16_62] : memref<8x32xf32, #tpu.memory_space<vmem>>, vector<8x8xf32>
    tpu.vector_store %arg16[%c0_61, %c16_62], %84 {strides = array<i32>} : memref<8x32xf32, #tpu.memory_space<vmem>>, vector<8x8xf32>,
    %c0_63 = arith.constant 0 : index
    %c24 = arith.constant 24 : index
    %86 = vector.load %arg13[%c0_63, %c24] : memref<8x32xf32, #tpu.memory_space<vmem>>, vector<8x8xf32>
    %87 = arith.truncf %86 : vector<8x8xf32> to vector<8x8xbf16>
    %c0_64 = arith.constant 0 : index
    %c24_65 = arith.constant 24 : index
    %88 = vector.load %arg14[%c0_64, %c24_65] : memref<8x32xf32, #tpu.memory_space<vmem>>, vector<8x8xf32>
    %89 = arith.truncf %88 : vector<8x8xf32> to vector<8x8xbf16>
    %c0_66 = arith.constant 0 : index
    %c24_67 = arith.constant 24 : index
    %90 = vector.load %arg15[%c0_66, %c24_67] : memref<8x32xf32, #tpu.memory_space<vmem>>, vector<8x8xf32>
    %91 = arith.truncf %90 : vector<8x8xf32> to vector<8x8xbf16>
    %cst_68 = arith.constant dense<0.000000e+00> : vector<8x8xf32>
    %92 = tpu.matmul %87, %89, %cst_68 {dimension_numbers = #tpu.dot_dimension_numbers<[1], [1], [0], [0], [0, 0, 1, 0], [], []>} : vector<8x8xbf16>, vector<8x8xbf16>, vector<8x8xf32> -> vector<8x8xf32>
    %cst_69 = arith.constant dense<0xFF800000> : vector<8xf32>
    %93 = vector.multi_reduction <maximumf>, %92, %cst_69 [1] : vector<8x8xf32> to vector<8xf32>
    %94 = vector.shape_cast %93 : vector<8xf32> to vector<8x1xf32>
    %95 = vector.broadcast %94 : vector<8x1xf32> to vector<8x8xf32>
    %96 = arith.subf %92, %95 : vector<8x8xf32>
    %97 = math.exp %96 : vector<8x8xf32>
    %cst_70 = arith.constant dense<0.000000e+00> : vector<8xf32>
    %98 = vector.multi_reduction <add>, %97, %cst_70 [1] : vector<8x8xf32> to vector<8xf32>
    %99 = vector.shape_cast %98 : vector<8xf32> to vector<8x1xf32>
    %100 = tpu.reciprocal %99 {approx = true} : vector<8x1xf32> -> vector<8x1xf32>
    %101 = vector.broadcast %100 : vector<8x1xf32> to vector<8x8xf32>
    %102 = arith.mulf %97, %101 : vector<8x8xf32>
    %103 = arith.truncf %102 : vector<8x8xf32> to vector<8x8xbf16>
    %cst_71 = arith.constant dense<0.000000e+00> : vector<8x8xf32>
    %104 = tpu.matmul %103, %91, %cst_71 {dimension_numbers = #tpu.dot_dimension_numbers<[1], [0], [0], [1], [0, 0, 1, 1], [], []>} : vector<8x8xbf16>, vector<8x8xbf16>, vector<8x8xf32> -> vector<8x8xf32>
    %c0_72 = arith.constant 0 : index
    %c24_73 = arith.constant 24 : index
    %105 = vector.load %arg16[%c0_72, %c24_73] : memref<8x32xf32, #tpu.memory_space<vmem>>, vector<8x8xf32>
    tpu.vector_store %arg16[%c0_72, %c24_73], %104 {strides = array<i32>} : memref<8x32xf32, #tpu.memory_space<vmem>>, vector<8x8xf32>,
    %c0_74 = arith.constant 0 : index
    %c0_75 = arith.constant 0 : index
    %106 = vector.load %arg16[%c0_74, %c0_75] : memref<8x32xf32, #tpu.memory_space<vmem>>, vector<8x32xf32>
    %107 = arith.truncf %106 : vector<8x32xf32> to vector<8x32xbf16>
    %c0_76 = arith.constant 0 : index
    %c0_77 = arith.constant 0 : index
    %108 = vector.load %arg10[%c0_76, %c0_77] : memref<32x32xbf16, #tpu.memory_space<vmem>>, vector<32x32xbf16>
    %cst_78 = arith.constant dense<0.000000e+00> : vector<8x32xf32>
    %109 = tpu.matmul %107, %108, %cst_78 {dimension_numbers = #tpu.dot_dimension_numbers<[1], [0], [0], [1], [0, 0, 1, 1], [], []>} : vector<8x32xbf16>, vector<32x32xbf16>, vector<8x32xf32> -> vector<8x32xf32>
    %c0_79 = arith.constant 0 : index
    %c0_80 = arith.constant 0 : index
    %110 = vector.load %arg11[%c0_79, %c0_80] : memref<1x32xf32, #tpu.memory_space<vmem>>, vector<1x32xf32>
    %111 = vector.broadcast %110 : vector<1x32xf32> to vector<8x32xf32>
    %112 = arith.addf %109, %111 : vector<8x32xf32>
    %c0_81 = arith.constant 0 : index
    %c0_82 = arith.constant 0 : index
    %c0_83 = arith.constant 0 : index
    %113 = vector.load %arg12[%c0_81, %c0_82, %c0_83] : memref<1x8x32xf32, #tpu.memory_space<vmem>>, vector<1x8x32xf32>
    %114 = vector.shape_cast %113 : vector<1x8x32xf32> to vector<8x32xf32>
    %115 = vector.shape_cast %112 : vector<8x32xf32> to vector<1x8x32xf32>
    tpu.vector_store %arg12[%c0_81, %c0_82, %c0_83], %115 {strides = array<i32>} : memref<1x8x32xf32, #tpu.memory_space<vmem>>, vector<1x8x32xf32>,
    return
  }
  func.func @transform_0(%arg0: i32) -> (i32, i32, i32) {
    %c0_i32 = arith.constant 0 : i32
    %c0_i32_0 = arith.constant 0 : i32
    %c0_i32_1 = arith.constant 0 : i32
    return %arg0, %c0_i32, %c0_i32_0 : i32, i32, i32
  }
  func.func @transform_1(%arg0: i32) -> (i32, i32, i32) {
    %c0_i32 = arith.constant 0 : i32
    %c0_i32_0 = arith.constant 0 : i32
    %c0_i32_1 = arith.constant 0 : i32
    return %arg0, %c0_i32, %c0_i32_0 : i32, i32, i32
  }
  func.func @transform_2(%arg0: i32) -> (i32, i32, i32) {
    %c0_i32 = arith.constant 0 : i32
    %c0_i32_0 = arith.constant 0 : i32
    %c0_i32_1 = arith.constant 0 : i32
    return %arg0, %c0_i32, %c0_i32_0 : i32, i32, i32
  }
  func.func @transform_3(%arg0: i32) -> (i32, i32) {
    %c0_i32 = arith.constant 0 : i32
    %c0_i32_0 = arith.constant 0 : i32
    %c0_i32_1 = arith.constant 0 : i32
    return %c0_i32, %c0_i32_0 : i32, i32
  }
  func.func @transform_4(%arg0: i32) -> (i32, i32) {
    %c0_i32 = arith.constant 0 : i32
    %c0_i32_0 = arith.constant 0 : i32
    %c0_i32_1 = arith.constant 0 : i32
    return %c0_i32, %c0_i32_0 : i32, i32
  }
  func.func @transform_5(%arg0: i32) -> (i32, i32) {
    %c0_i32 = arith.constant 0 : i32
    %c0_i32_0 = arith.constant 0 : i32
    %c0_i32_1 = arith.constant 0 : i32
    return %c0_i32, %c0_i32_0 : i32, i32
  }
  func.func @transform_6(%arg0: i32) -> (i32, i32) {
    %c0_i32 = arith.constant 0 : i32
    %c0_i32_0 = arith.constant 0 : i32
    %c0_i32_1 = arith.constant 0 : i32
    return %c0_i32, %c0_i32_0 : i32, i32
  }
  func.func @transform_7(%arg0: i32) -> (i32, i32) {
    %c0_i32 = arith.constant 0 : i32
    %c0_i32_0 = arith.constant 0 : i32
    %c0_i32_1 = arith.constant 0 : i32
    return %c0_i32, %c0_i32_0 : i32, i32
  }
  func.func @transform_8(%arg0: i32) -> (i32, i32) {
    %c0_i32 = arith.constant 0 : i32
    %c0_i32_0 = arith.constant 0 : i32
    %c0_i32_1 = arith.constant 0 : i32
    return %c0_i32, %c0_i32_0 : i32, i32
  }
  func.func @transform_9(%arg0: i32) -> (i32, i32) {
    %c0_i32 = arith.constant 0 : i32
    %c0_i32_0 = arith.constant 0 : i32
    %c0_i32_1 = arith.constant 0 : i32
    return %c0_i32, %c0_i32_0 : i32, i32
  }
  func.func @transform_10(%arg0: i32) -> (i32, i32) {
    %c0_i32 = arith.constant 0 : i32
    %c0_i32_0 = arith.constant 0 : i32
    %c0_i32_1 = arith.constant 0 : i32
    return %c0_i32, %c0_i32_0 : i32, i32
  }
  func.func @transform_11(%arg0: i32) -> (i32, i32, i32) {
    %c0_i32 = arith.constant 0 : i32
    %c0_i32_0 = arith.constant 0 : i32
    %c0_i32_1 = arith.constant 0 : i32
    return %arg0, %c0_i32, %c0_i32_0 : i32, i32, i32
  }
}

</mosaic_0001>

<llo_original>
// kernel: tpu_custom_call.1
$region0: #{tpu_custom_call.1}
  #allocation0 [shape = 'u32[]', space=smem, size = 0x4, offset = 0x4, fixed_abs, tag = 'smem constant byte address 0x4 - core index']
  #allocation1 [shape = 'u32[144,128]{1,0:T(1,128)}', space=vmem, size = 0x12000, scoped, tag = 'internal scratch']
  #allocation2 [shape = 'f32[8,32]{1,0:T(8,128)}', space=vmem, size = 0x1000, scoped, tag = 'scratch operand']
  #allocation3 [shape = 'f32[8,32]{1,0:T(8,128)}', space=vmem, size = 0x1000, scoped, tag = 'scratch operand']
  #allocation4 [shape = 'f32[8,32]{1,0:T(8,128)}', space=vmem, size = 0x1000, scoped, tag = 'scratch operand']
  #allocation5 [shape = 'f32[8,32]{1,0:T(8,128)}', space=vmem, size = 0x1000, scoped, tag = 'scratch operand']
  %s0 = inlined_call_operand.hbm [shape: bf16[2,8,32], index: 0, kind: input, shape index: {}]
  %s1 = inlined_call_operand.hbm [shape: bf16[2,8,32], index: 1, kind: input, shape index: {}]
  %s2 = inlined_call_operand.hbm [shape: bf16[2,8,32], index: 2, kind: input, shape index: {}]
  %s3 = inlined_call_operand.hbm [shape: bf16[32,32], index: 3, kind: input, shape index: {}]
  %s4 = inlined_call_operand.hbm [shape: f32[1,32], index: 4, kind: input, shape index: {}]
  %s5 = inlined_call_operand.hbm [shape: bf16[32,32], index: 5, kind: input, shape index: {}]
  %s6 = inlined_call_operand.hbm [shape: f32[1,32], index: 6, kind: input, shape index: {}]
  %s7 = inlined_call_operand.hbm [shape: bf16[32,32], index: 7, kind: input, shape index: {}]
  %s8 = inlined_call_operand.hbm [shape: f32[1,32], index: 8, kind: input, shape index: {}]
  %s9 = inlined_call_operand.vmem [shape: bf16[32,32], index: 9, kind: input, shape index: {}]
  %s10 = inlined_call_operand.vmem [shape: f32[1,32], index: 10, kind: input, shape index: {}]
  %s11 = inlined_call_operand.hbm [shape: f32[2,8,32], index: 11, kind: output, shape index: {}]
  %s12 = sld [smem:[#allocation0]]
  $region113: #{tpu_custom_call.1} parent=0
    _
  %s14 = ssub.s32 1, %s12
  %s15 = scalar_select 0, %s14, %s12
  $region1: #{tpu_custom_call.1} parent=0
    #allocation6 [shape = 'u8[4096]{0}', space=vmem, size = 0x1000, scoped, tag = 'input window, operand 0']
    #allocation7 [shape = 's32[2]{0}', space=sflag, size = 0x8, scoped, tag = 'scoped memory for tpu_custom_call.1']
    #allocation8 [shape = 's32[2]{0}', space=sflag, size = 0x8, scoped, tag = 'scoped memory for tpu_custom_call.1']
    #allocation9 [shape = 'u8[4096]{0}', space=vmem, size = 0x1000, scoped, tag = 'input window, operand 1']
    #allocation10 [shape = 's32[2]{0}', space=sflag, size = 0x8, scoped, tag = 'scoped memory for tpu_custom_call.1']
    #allocation11 [shape = 'u8[4096]{0}', space=vmem, size = 0x1000, scoped, tag = 'input window, operand 2']
    #allocation12 [shape = 'u8[8192]{0}', space=vmem, size = 0x2000, scoped, tag = 'input window, operand 3, single buffered']
    #allocation13 [shape = 's32[1]{0}', space=sflag, size = 0x4, scoped, tag = 'scoped memory for tpu_custom_call.1']
    #allocation14 [shape = 'u8[512]{0}', space=vmem, size = 0x400, scoped, tag = 'input window, operand 4, single buffered']
    #allocation15 [shape = 'u8[8192]{0}', space=vmem, size = 0x2000, scoped, tag = 'input window, operand 5, single buffered']
    #allocation16 [shape = 's32[1]{0}', space=sflag, size = 0x4, scoped, tag = 'scoped memory for tpu_custom_call.1']
    #allocation17 [shape = 'u8[512]{0}', space=vmem, size = 0x400, scoped, tag = 'input window, operand 6, single buffered']
    #allocation18 [shape = 'u8[8192]{0}', space=vmem, size = 0x2000, scoped, tag = 'input window, operand 7, single buffered']
    #allocation19 [shape = 's32[1]{0}', space=sflag, size = 0x4, scoped, tag = 'scoped memory for tpu_custom_call.1']
    #allocation20 [shape = 'u8[512]{0}', space=vmem, size = 0x400, scoped, tag = 'input window, operand 8, single buffered']
    #allocation21 [shape = 'u8[8192]{0}', space=vmem, size = 0x2000, scoped, tag = 'output window, operand 0']
    %16 = vsyncpa [#allocation7], 0
    %s17 = scalar_lea.sflag [#allocation7], 1
    %18 = vsyncpa %s17, 0
    %19 = vsyncpa [#allocation10], 0
    %s20 = scalar_lea.sflag [#allocation10], 1
    %21 = vsyncpa %s20, 0
    %22 = vsyncpa [#allocation13], 0
    %23 = vsyncpa [#allocation16], 0
    %24 = vsyncpa [#allocation19], 0
    %25 = vsyncpa [#allocation8], 0
    %s26 = scalar_lea.sflag [#allocation8], 1
    %27 = vsyncpa %s26, 0
    loop: start=0, step=1, limit=4
    $region2: #{tpu_custom_call.1} parent=1 // loop_pre_header
      _
    $region3: #{tpu_custom_call.1} parent=1 // loop_header
      %s29 = sphi 0, %s33
      %p30 = scmp.ge.s32.totalorder %s29, 4
      %s39 = sphi 0, %s41
      %s42 = sphi 0, %s39
      %s43 = sphi 0, %s42
      %s59 = sphi 0, %s43
      %s65 = sphi 0, %s67
      %s68 = sphi 0, %s65
      %s69 = sphi 0, %s68
      %s85 = sphi 0, %s69
      %s91 = sphi 0, %s93
      %s94 = sphi 0, %s91
      %s95 = sphi 0, %s94
      %s111 = sphi 0, %s95
      %s115 = sphi 0, %s115
      %s117 = sphi 0, %s115
      %s118 = sphi 0, %s117
      %s132 = sphi 0, %s118
      %s136 = sphi 0, %s136
      %s138 = sphi 0, %s136
      %s139 = sphi 0, %s138
      %s153 = sphi 0, %s139
      %s157 = sphi 0, %s157
      %s159 = sphi 0, %s157
      %s160 = sphi 0, %s159
      %s174 = sphi 0, %s160
      %s178 = sphi 0, %s178
      %s180 = sphi 0, %s178
      %s181 = sphi 0, %s180
      %s195 = sphi 0, %s181
      %s199 = sphi 0, %s199
      %s201 = sphi 0, %s199
      %s202 = sphi 0, %s201
      %s216 = sphi 0, %s202
      %s220 = sphi 0, %s220
      %s222 = sphi 0, %s220
      %s223 = sphi 0, %s222
      %s237 = sphi 0, %s223
      %s241 = sphi 0, %s241
      %s243 = sphi 0, %s241
      %s244 = sphi 0, %s243
      %s258 = sphi 0, %s244
      %s262 = sphi 0, %s262
      %s264 = sphi 0, %s262
      %s265 = sphi 0, %s264
      %s279 = sphi 0, %s265
      %s285 = sphi 0, %s287
      %s288 = sphi 0, %s285
      %s289 = sphi 0, %s288
      %s305 = sphi 0, %s289
    $region4: #{tpu_custom_call.1} parent=1 // loop_header_branch
      %32 = sbr.rel (%p30) target = $region8
    $region5: #{tpu_custom_call.1} parent=1 // loop_body
      %s34 = ssub.s32 %s29, 1
      %s35 = ssub.s32 %s29, 2
      %s36 = sadd.s32 %s29, 1
      %s37 = ssub.s32 %s29, %s36
      %p38 = scmp.eq.s32.totalorder %s37, 0
      %s40 = sadd.s32 %s39, 1
      %s41 = scalar_select %p38, %s39, %s40
      %p44 = pneg %p38
      %p45 = scmp.eq.s32.totalorder %s29, 1
      %p46 = por %p44, %p45
      %p47 = scmp.ne.s32.totalorder %s39, %s42
      %p48 = scmp.eq.s32.totalorder %s29, 0
      %p49 = por %p47, %p48
      %p50 = scmp.ne.s32.totalorder %s39, %s42
      %p51 = scmp.eq.s32.totalorder %s34, 1
      %p52 = por %p50, %p51
      %p53 = scmp.ne.s32.totalorder %s42, %s43
      %p54 = scmp.eq.s32.totalorder %s34, 0
      %p55 = por %p53, %p54
      %p56 = scmp.ne.s32.totalorder %s42, %s43
      %p57 = scmp.eq.s32.totalorder %s35, 1
      %p58 = por %p56, %p57
      %p60 = scmp.ne.s32.totalorder %s43, %s59
      %p61 = scmp.eq.s32.totalorder %s35, 0
      %p62 = por %p60, %p61
      %s63 = ssub.s32 %s29, %s36
      %p64 = scmp.eq.s32.totalorder %s63, 0
      %s66 = sadd.s32 %s65, 1
      %s67 = scalar_select %p64, %s65, %s66
      %p70 = pneg %p64
      %p71 = scmp.eq.s32.totalorder %s29, 1
      %p72 = por %p70, %p71
      %p73 = scmp.ne.s32.totalorder %s65, %s68
      %p74 = scmp.eq.s32.totalorder %s29, 0
      %p75 = por %p73, %p74
      %p76 = scmp.ne.s32.totalorder %s65, %s68
      %p77 = scmp.eq.s32.totalorder %s34, 1
      %p78 = por %p76, %p77
      %p79 = scmp.ne.s32.totalorder %s68, %s69
      %p80 = scmp.eq.s32.totalorder %s34, 0
      %p81 = por %p79, %p80
      %p82 = scmp.ne.s32.totalorder %s68, %s69
      %p83 = scmp.eq.s32.totalorder %s35, 1
      %p84 = por %p82, %p83
      %p86 = scmp.ne.s32.totalorder %s69, %s85
      %p87 = scmp.eq.s32.totalorder %s35, 0
      %p88 = por %p86, %p87
      %s89 = ssub.s32 %s29, %s36
      %p90 = scmp.eq.s32.totalorder %s89, 0
      %s92 = sadd.s32 %s91, 1
      %s93 = scalar_select %p90, %s91, %s92
      %p96 = pneg %p90
      %p97 = scmp.eq.s32.totalorder %s29, 1
      %p98 = por %p96, %p97
      %p99 = scmp.ne.s32.totalorder %s91, %s94
      %p100 = scmp.eq.s32.totalorder %s29, 0
      %p101 = por %p99, %p100
      %p102 = scmp.ne.s32.totalorder %s91, %s94
      %p103 = scmp.eq.s32.totalorder %s34, 1
      %p104 = por %p102, %p103
      %p105 = scmp.ne.s32.totalorder %s94, %s95
      %p106 = scmp.eq.s32.totalorder %s34, 0
      %p107 = por %p105, %p106
      %p108 = scmp.ne.s32.totalorder %s94, %s95
      %p109 = scmp.eq.s32.totalorder %s35, 1
      %p110 = por %p108, %p109
      %p112 = scmp.ne.s32.totalorder %s95, %s111
      %p113 = scmp.eq.s32.totalorder %s35, 0
      %p114 = por %p112, %p113
      %s116 = sadd.s32 %s115, 1
      %p119 = scmp.eq.s32.totalorder %s29, 1
      %p120 = scmp.ne.s32.totalorder %s115, %s117
      %p121 = scmp.eq.s32.totalorder %s29, 0
      %p122 = por %p120, %p121
      %p123 = scmp.ne.s32.totalorder %s115, %s117
      %p124 = scmp.eq.s32.totalorder %s34, 1
      %p125 = por %p123, %p124
      %p126 = scmp.ne.s32.totalorder %s117, %s118
      %p127 = scmp.eq.s32.totalorder %s34, 0
      %p128 = por %p126, %p127
      %p129 = scmp.ne.s32.totalorder %s117, %s118
      %p130 = scmp.eq.s32.totalorder %s35, 1
      %p131 = por %p129, %p130
      %p133 = scmp.ne.s32.totalorder %s118, %s132
      %p134 = scmp.eq.s32.totalorder %s35, 0
      %p135 = por %p133, %p134
      %s137 = sadd.s32 %s136, 1
      %p140 = scmp.eq.s32.totalorder %s29, 1
      %p141 = scmp.ne.s32.totalorder %s136, %s138
      %p142 = scmp.eq.s32.totalorder %s29, 0
      %p143 = por %p141, %p142
      %p144 = scmp.ne.s32.totalorder %s136, %s138
      %p145 = scmp.eq.s32.totalorder %s34, 1
      %p146 = por %p144, %p145
      %p147 = scmp.ne.s32.totalorder %s138, %s139
      %p148 = scmp.eq.s32.totalorder %s34, 0
      %p149 = por %p147, %p148
      %p150 = scmp.ne.s32.totalorder %s138, %s139
      %p151 = scmp.eq.s32.totalorder %s35, 1
      %p152 = por %p150, %p151
      %p154 = scmp.ne.s32.totalorder %s139, %s153
      %p155 = scmp.eq.s32.totalorder %s35, 0
      %p156 = por %p154, %p155
      %s158 = sadd.s32 %s157, 1
      %p161 = scmp.eq.s32.totalorder %s29, 1
      %p162 = scmp.ne.s32.totalorder %s157, %s159
      %p163 = scmp.eq.s32.totalorder %s29, 0
      %p164 = por %p162, %p163
      %p165 = scmp.ne.s32.totalorder %s157, %s159
      %p166 = scmp.eq.s32.totalorder %s34, 1
      %p167 = por %p165, %p166
      %p168 = scmp.ne.s32.totalorder %s159, %s160
      %p169 = scmp.eq.s32.totalorder %s34, 0
      %p170 = por %p168, %p169
      %p171 = scmp.ne.s32.totalorder %s159, %s160
      %p172 = scmp.eq.s32.totalorder %s35, 1
      %p173 = por %p171, %p172
      %p175 = scmp.ne.s32.totalorder %s160, %s174
      %p176 = scmp.eq.s32.totalorder %s35, 0
      %p177 = por %p175, %p176
      %s179 = sadd.s32 %s178, 1
      %p182 = scmp.eq.s32.totalorder %s29, 1
      %p183 = scmp.ne.s32.totalorder %s178, %s180
      %p184 = scmp.eq.s32.totalorder %s29, 0
      %p185 = por %p183, %p184
      %p186 = scmp.ne.s32.totalorder %s178, %s180
      %p187 = scmp.eq.s32.totalorder %s34, 1
      %p188 = por %p186, %p187
      %p189 = scmp.ne.s32.totalorder %s180, %s181
      %p190 = scmp.eq.s32.totalorder %s34, 0
      %p191 = por %p189, %p190
      %p192 = scmp.ne.s32.totalorder %s180, %s181
      %p193 = scmp.eq.s32.totalorder %s35, 1
      %p194 = por %p192, %p193
      %p196 = scmp.ne.s32.totalorder %s181, %s195
      %p197 = scmp.eq.s32.totalorder %s35, 0
      %p198 = por %p196, %p197
      %s200 = sadd.s32 %s199, 1
      %p203 = scmp.eq.s32.totalorder %s29, 1
      %p204 = scmp.ne.s32.totalorder %s199, %s201
      %p205 = scmp.eq.s32.totalorder %s29, 0
      %p206 = por %p204, %p205
      %p207 = scmp.ne.s32.totalorder %s199, %s201
      %p208 = scmp.eq.s32.totalorder %s34, 1
      %p209 = por %p207, %p208
      %p210 = scmp.ne.s32.totalorder %s201, %s202
      %p211 = scmp.eq.s32.totalorder %s34, 0
      %p212 = por %p210, %p211
      %p213 = scmp.ne.s32.totalorder %s201, %s202
      %p214 = scmp.eq.s32.totalorder %s35, 1
      %p215 = por %p213, %p214
      %p217 = scmp.ne.s32.totalorder %s202, %s216
      %p218 = scmp.eq.s32.totalorder %s35, 0
      %p219 = por %p217, %p218
      %s221 = sadd.s32 %s220, 1
      %p224 = scmp.eq.s32.totalorder %s29, 1
      %p225 = scmp.ne.s32.totalorder %s220, %s222
      %p226 = scmp.eq.s32.totalorder %s29, 0
      %p227 = por %p225, %p226
      %p228 = scmp.ne.s32.totalorder %s220, %s222
      %p229 = scmp.eq.s32.totalorder %s34, 1
      %p230 = por %p228, %p229
      %p231 = scmp.ne.s32.totalorder %s222, %s223
      %p232 = scmp.eq.s32.totalorder %s34, 0
      %p233 = por %p231, %p232
      %p234 = scmp.ne.s32.totalorder %s222, %s223
      %p235 = scmp.eq.s32.totalorder %s35, 1
      %p236 = por %p234, %p235
      %p238 = scmp.ne.s32.totalorder %s223, %s237
      %p239 = scmp.eq.s32.totalorder %s35, 0
      %p240 = por %p238, %p239
      %s242 = sadd.s32 %s241, 1
      %p245 = scmp.eq.s32.totalorder %s29, 1
      %p246 = scmp.ne.s32.totalorder %s241, %s243
      %p247 = scmp.eq.s32.totalorder %s29, 0
      %p248 = por %p246, %p247
      %p249 = scmp.ne.s32.totalorder %s241, %s243
      %p250 = scmp.eq.s32.totalorder %s34, 1
      %p251 = por %p249, %p250
      %p252 = scmp.ne.s32.totalorder %s243, %s244
      %p253 = scmp.eq.s32.totalorder %s34, 0
      %p254 = por %p252, %p253
      %p255 = scmp.ne.s32.totalorder %s243, %s244
      %p256 = scmp.eq.s32.totalorder %s35, 1
      %p257 = por %p255, %p256
      %p259 = scmp.ne.s32.totalorder %s244, %s258
      %p260 = scmp.eq.s32.totalorder %s35, 0
      %p261 = por %p259, %p260
      %s263 = sadd.s32 %s262, 1
      %p266 = scmp.eq.s32.totalorder %s29, 1
      %p267 = scmp.ne.s32.totalorder %s262, %s264
      %p268 = scmp.eq.s32.totalorder %s29, 0
      %p269 = por %p267, %p268
      %p270 = scmp.ne.s32.totalorder %s262, %s264
      %p271 = scmp.eq.s32.totalorder %s34, 1
      %p272 = por %p270, %p271
      %p273 = scmp.ne.s32.totalorder %s264, %s265
      %p274 = scmp.eq.s32.totalorder %s34, 0
      %p275 = por %p273, %p274
      %p276 = scmp.ne.s32.totalorder %s264, %s265
      %p277 = scmp.eq.s32.totalorder %s35, 1
      %p278 = por %p276, %p277
      %p280 = scmp.ne.s32.totalorder %s265, %s279
      %p281 = scmp.eq.s32.totalorder %s35, 0
      %p282 = por %p280, %p281
      %s283 = ssub.s32 %s29, %s36
      %p284 = scmp.eq.s32.totalorder %s283, 0
      %s286 = sadd.s32 %s285, 1
      %s287 = scalar_select %p284, %s285, %s286
      %p290 = pneg %p284
      %p291 = scmp.eq.s32.totalorder %s29, 1
      %p292 = por %p290, %p291
      %p293 = scmp.ne.s32.totalorder %s285, %s288
      %p294 = scmp.eq.s32.totalorder %s29, 0
      %p295 = por %p293, %p294
      %p296 = scmp.ne.s32.totalorder %s285, %s288
      %p297 = scmp.eq.s32.totalorder %s34, 1
      %p298 = por %p296, %p297
      %p299 = scmp.ne.s32.totalorder %s288, %s289
      %p300 = scmp.eq.s32.totalorder %s34, 0
      %p301 = por %p299, %p300
      %p302 = scmp.ne.s32.totalorder %s288, %s289
      %p303 = scmp.eq.s32.totalorder %s35, 1
      %p304 = por %p302, %p303
      %p306 = scmp.ne.s32.totalorder %s289, %s305
      %p307 = scmp.eq.s32.totalorder %s35, 0
      %p308 = por %p306, %p307
      %p309 = scmp.le.s32.totalorder 1, %s29
      %p310 = scmp.lt.s32.totalorder %s29, 3
      %p311 = pnand %p309, %p310
      %p312 = pneg %p311
      // Predicated region
      $region9: #{tpu_custom_call.1} parent=5 // pred_check
        _
      $region10: #{tpu_custom_call.1} parent=5 // pred_check_branch
        %314 = sbr.rel (%p311) target = $region12
      $region11: #{tpu_custom_call.1} parent=5 // pred_region
        %s315 = ssub.s32 %s29, 1
        // Predicated region
        $region13: #{tpu_custom_call.1} parent=11 // pred_check
          %p316 = pneg %p128
        $region14: #{tpu_custom_call.1} parent=11 // pred_check_branch
          %318 = sbr.rel (%p316) target = $region16
        $region15: #{tpu_custom_call.1} parent=11 // pred_region
          %s320 = ssub.s32 256, 256
          %321 = vsyncadd [#allocation13], %s320
          %s322 = sshll.u32 [#allocation12], 4
          %s323 = int_to_ptr.vmem [resolvable:$true] %s322
          %328 = dma.hbm_to_vmem [thread:$0]  %s3, 256, %s323, [#allocation13], 64, 64, 4
        $region16: #{tpu_custom_call.1} parent=11 // pred_fallthru
          _
        // Predicated region
        $region17: #{tpu_custom_call.1} parent=11 // pred_check
          %p329 = pneg %p149
        $region18: #{tpu_custom_call.1} parent=11 // pred_check_branch
          %331 = sbr.rel (%p329) target = $region20
        $region19: #{tpu_custom_call.1} parent=11 // pred_region
          %s333 = ssub.s32 16, 16
          %334 = vsyncadd [#allocation13], %s333
          %s336 = sshll.u32 [#allocation14], 4
          %s337 = int_to_ptr.vmem [resolvable:$true] %s336
          %339 = dma.hbm_to_vmem [thread:$0]  %s4, 16, %s337, [#allocation13]
        $region20: #{tpu_custom_call.1} parent=11 // pred_fallthru
          _
        // Predicated region
        $region21: #{tpu_custom_call.1} parent=11 // pred_check
          %p340 = pneg %p170
        $region22: #{tpu_custom_call.1} parent=11 // pred_check_branch
          %342 = sbr.rel (%p340) target = $region24
        $region23: #{tpu_custom_call.1} parent=11 // pred_region
          %s344 = ssub.s32 256, 256
          %345 = vsyncadd [#allocation16], %s344
          %s346 = sshll.u32 [#allocation15], 4
          %s347 = int_to_ptr.vmem [resolvable:$true] %s346
          %352 = dma.hbm_to_vmem [thread:$0]  %s5, 256, %s347, [#allocation16], 64, 64, 4
        $region24: #{tpu_custom_call.1} parent=11 // pred_fallthru
          _
        // Predicated region
        $region25: #{tpu_custom_call.1} parent=11 // pred_check
          %p353 = pneg %p191
        $region26: #{tpu_custom_call.1} parent=11 // pred_check_branch
          %355 = sbr.rel (%p353) target = $region28
        $region27: #{tpu_custom_call.1} parent=11 // pred_region
          %s357 = ssub.s32 16, 16
          %358 = vsyncadd [#allocation16], %s357
          %s360 = sshll.u32 [#allocation17], 4
          %s361 = int_to_ptr.vmem [resolvable:$true] %s360
          %363 = dma.hbm_to_vmem [thread:$0]  %s6, 16, %s361, [#allocation16]
        $region28: #{tpu_custom_call.1} parent=11 // pred_fallthru
          _
        // Predicated region
        $region29: #{tpu_custom_call.1} parent=11 // pred_check
          %p364 = pneg %p212
        $region30: #{tpu_custom_call.1} parent=11 // pred_check_branch
          %366 = sbr.rel (%p364) target = $region32
        $region31: #{tpu_custom_call.1} parent=11 // pred_region
          %s368 = ssub.s32 256, 256
          %369 = vsyncadd [#allocation19], %s368
          %s370 = sshll.u32 [#allocation18], 4
          %s371 = int_to_ptr.vmem [resolvable:$true] %s370
          %376 = dma.hbm_to_vmem [thread:$0]  %s7, 256, %s371, [#allocation19], 64, 64, 4
        $region32: #{tpu_custom_call.1} parent=11 // pred_fallthru
          _
        // Predicated region
        $region33: #{tpu_custom_call.1} parent=11 // pred_check
          %p377 = pneg %p233
        $region34: #{tpu_custom_call.1} parent=11 // pred_check_branch
          %379 = sbr.rel (%p377) target = $region36
        $region35: #{tpu_custom_call.1} parent=11 // pred_region
          %s381 = ssub.s32 16, 16
          %382 = vsyncadd [#allocation19], %s381
          %s384 = sshll.u32 [#allocation20], 4
          %s385 = int_to_ptr.vmem [resolvable:$true] %s384
          %387 = dma.hbm_to_vmem [thread:$0]  %s8, 16, %s385, [#allocation19]
        $region36: #{tpu_custom_call.1} parent=11 // pred_fallthru
          _
        // Predicated region
        $region37: #{tpu_custom_call.1} parent=11 // pred_check
          %p388 = pneg %p254
        $region38: #{tpu_custom_call.1} parent=11 // pred_check_branch
          %390 = sbr.rel (%p388) target = $region40
        $region39: #{tpu_custom_call.1} parent=11 // pred_region
          _
        $region40: #{tpu_custom_call.1} parent=11 // pred_fallthru
          _
        // Predicated region
        $region41: #{tpu_custom_call.1} parent=11 // pred_check
          %p391 = pneg %p275
        $region42: #{tpu_custom_call.1} parent=11 // pred_check_branch
          %393 = sbr.rel (%p391) target = $region44
        $region43: #{tpu_custom_call.1} parent=11 // pred_region
          _
        $region44: #{tpu_custom_call.1} parent=11 // pred_fallthru
          _
      $region12: #{tpu_custom_call.1} parent=5 // pred_fallthru
        _
      %p394 = scmp.lt.s32.totalorder %s29, 2
      // Predicated region
      $region45: #{tpu_custom_call.1} parent=5 // pred_check
        %p395 = pneg %p394
      $region46: #{tpu_custom_call.1} parent=5 // pred_check_branch
        %397 = sbr.rel (%p395) target = $region48
      $region47: #{tpu_custom_call.1} parent=5 // pred_region
        // Predicated region
        $region49: #{tpu_custom_call.1} parent=47 // pred_check
          %p398 = pneg %p49
        $region50: #{tpu_custom_call.1} parent=47 // pred_check_branch
          %400 = sbr.rel (%p398) target = $region52
        $region51: #{tpu_custom_call.1} parent=47 // pred_region
          %s401 = sand.u32 %s39, 1
          %s402 = scalar_lea.sflag [#allocation7], %s401
          %s403 = sand.u32 %s39, 1
          %s404 = smul.addr %s403, 4
          %s405 = scalar_lea.vmem [#allocation6], %s404
          %s407 = ssub.s32 64, 64
          %408 = vsyncadd %s402, %s407
          %s409 = smul.addr %s29, 64
          %s410 = scalar_lea.hbm %s0, %s409
          %s412 = sshll.u32 %s405, 4
          %s413 = int_to_ptr.vmem [resolvable:$true] %s412
          %415 = dma.hbm_to_vmem [thread:$0]  %s410, 64, %s413, %s402
        $region52: #{tpu_custom_call.1} parent=47 // pred_fallthru
          _
        // Predicated region
        $region53: #{tpu_custom_call.1} parent=47 // pred_check
          %p416 = pneg %p75
        $region54: #{tpu_custom_call.1} parent=47 // pred_check_branch
          %418 = sbr.rel (%p416) target = $region56
        $region55: #{tpu_custom_call.1} parent=47 // pred_region
          %s419 = sand.u32 %s29, 1
          %s420 = scalar_lea.sflag [#allocation10], %s419
          %s421 = sand.u32 %s65, 1
          %s422 = smul.addr %s421, 4
          %s423 = scalar_lea.vmem [#allocation9], %s422
          %s425 = ssub.s32 64, 64
          %426 = vsyncadd %s420, %s425
          %s427 = smul.addr %s29, 64
          %s428 = scalar_lea.hbm %s1, %s427
          %s430 = sshll.u32 %s423, 4
          %s431 = int_to_ptr.vmem [resolvable:$true] %s430
          %433 = dma.hbm_to_vmem [thread:$0]  %s428, 64, %s431, %s420
        $region56: #{tpu_custom_call.1} parent=47 // pred_fallthru
          _
        // Predicated region
        $region57: #{tpu_custom_call.1} parent=47 // pred_check
          %p434 = pneg %p101
        $region58: #{tpu_custom_call.1} parent=47 // pred_check_branch
          %436 = sbr.rel (%p434) target = $region60
        $region59: #{tpu_custom_call.1} parent=47 // pred_region
          %s437 = sand.u32 %s29, 1
          %s438 = scalar_lea.sflag [#allocation10], %s437
          %s439 = sand.u32 %s91, 1
          %s440 = smul.addr %s439, 4
          %s441 = scalar_lea.vmem [#allocation11], %s440
          %s443 = ssub.s32 64, 64
          %444 = vsyncadd %s438, %s443
          %s445 = smul.addr %s29, 64
          %s446 = scalar_lea.hbm %s2, %s445
          %s448 = sshll.u32 %s441, 4
          %s449 = int_to_ptr.vmem [resolvable:$true] %s448
          %451 = dma.hbm_to_vmem [thread:$0]  %s446, 64, %s449, %s438
        $region60: #{tpu_custom_call.1} parent=47 // pred_fallthru
          _
      $region48: #{tpu_custom_call.1} parent=5 // pred_fallthru
        _
      %p452 = scmp.le.s32.totalorder 1, %s29
      %p453 = scmp.lt.s32.totalorder %s29, 3
      %p454 = pnand %p452, %p453
      %p455 = pneg %p454
      // Predicated region
      $region61: #{tpu_custom_call.1} parent=5 // pred_check
        _
      $region62: #{tpu_custom_call.1} parent=5 // pred_check_branch
        %457 = sbr.rel (%p454) target = $region64
      $region63: #{tpu_custom_call.1} parent=5 // pred_region
        %s458 = ssub.s32 %s29, 1
        %s459 = sand.u32 %s42, 1
        %s460 = scalar_lea.sflag [#allocation7], %s459
        %s461 = sand.u32 %s42, 1
        %s462 = smul.addr %s461, 4
        %s463 = scalar_lea.vmem [#allocation6], %s462
        // Predicated region
        $region65: #{tpu_custom_call.1} parent=63 // pred_check
          %p464 = pneg %p55
        $region66: #{tpu_custom_call.1} parent=63 // pred_check_branch
          %466 = sbr.rel (%p464) target = $region68
        $region67: #{tpu_custom_call.1} parent=63 // pred_region
          %467 = dma.done %s460, 64
        $region68: #{tpu_custom_call.1} parent=63 // pred_fallthru
          _
        %s468 = sand.u32 %s34, 1
        %s469 = scalar_lea.sflag [#allocation10], %s468
        %s470 = sand.u32 %s68, 1
        %s471 = smul.addr %s470, 4
        %s472 = scalar_lea.vmem [#allocation9], %s471
        // Predicated region
        $region69: #{tpu_custom_call.1} parent=63 // pred_check
          %p473 = pneg %p81
        $region70: #{tpu_custom_call.1} parent=63 // pred_check_branch
          %475 = sbr.rel (%p473) target = $region72
        $region71: #{tpu_custom_call.1} parent=63 // pred_region
          %476 = dma.done %s469, 64
        $region72: #{tpu_custom_call.1} parent=63 // pred_fallthru
          _
        %s477 = sand.u32 %s34, 1
        %s478 = scalar_lea.sflag [#allocation10], %s477
        %s479 = sand.u32 %s94, 1
        %s480 = smul.addr %s479, 4
        %s481 = scalar_lea.vmem [#allocation11], %s480
        // Predicated region
        $region73: #{tpu_custom_call.1} parent=63 // pred_check
          %p482 = pneg %p107
        $region74: #{tpu_custom_call.1} parent=63 // pred_check_branch
          %484 = sbr.rel (%p482) target = $region76
        $region75: #{tpu_custom_call.1} parent=63 // pred_region
          %485 = dma.done %s478, 64
        $region76: #{tpu_custom_call.1} parent=63 // pred_fallthru
          _
        // Predicated region
        $region77: #{tpu_custom_call.1} parent=63 // pred_check
          %p486 = pneg %p128
        $region78: #{tpu_custom_call.1} parent=63 // pred_check_branch
          %488 = sbr.rel (%p486) target = $region80
        $region79: #{tpu_custom_call.1} parent=63 // pred_region
          %489 = dma.done [#allocation13], 256
        $region80: #{tpu_custom_call.1} parent=63 // pred_fallthru
          _
        // Predicated region
        $region81: #{tpu_custom_call.1} parent=63 // pred_check
          %p490 = pneg %p149
        $region82: #{tpu_custom_call.1} parent=63 // pred_check_branch
          %492 = sbr.rel (%p490) target = $region84
        $region83: #{tpu_custom_call.1} parent=63 // pred_region
          %493 = dma.done [#allocation13], 16
        $region84: #{tpu_custom_call.1} parent=63 // pred_fallthru
          _
        // Predicated region
        $region85: #{tpu_custom_call.1} parent=63 // pred_check
          %p494 = pneg %p170
        $region86: #{tpu_custom_call.1} parent=63 // pred_check_branch
          %496 = sbr.rel (%p494) target = $region88
        $region87: #{tpu_custom_call.1} parent=63 // pred_region
          %497 = dma.done [#allocation16], 256
        $region88: #{tpu_custom_call.1} parent=63 // pred_fallthru
          _
        // Predicated region
        $region89: #{tpu_custom_call.1} parent=63 // pred_check
          %p498 = pneg %p191
        $region90: #{tpu_custom_call.1} parent=63 // pred_check_branch
          %500 = sbr.rel (%p498) target = $region92
        $region91: #{tpu_custom_call.1} parent=63 // pred_region
          %501 = dma.done [#allocation16], 16
        $region92: #{tpu_custom_call.1} parent=63 // pred_fallthru
          _
        // Predicated region
        $region93: #{tpu_custom_call.1} parent=63 // pred_check
          %p502 = pneg %p212
        $region94: #{tpu_custom_call.1} parent=63 // pred_check_branch
          %504 = sbr.rel (%p502) target = $region96
        $region95: #{tpu_custom_call.1} parent=63 // pred_region
          %505 = dma.done [#allocation19], 256
        $region96: #{tpu_custom_call.1} parent=63 // pred_fallthru
          _
        // Predicated region
        $region97: #{tpu_custom_call.1} parent=63 // pred_check
          %p506 = pneg %p233
        $region98: #{tpu_custom_call.1} parent=63 // pred_check_branch
          %508 = sbr.rel (%p506) target = $region100
        $region99: #{tpu_custom_call.1} parent=63 // pred_region
          %509 = dma.done [#allocation19], 16
        $region100: #{tpu_custom_call.1} parent=63 // pred_fallthru
          _
        %s510 = sand.u32 %s42, 1
        %s511 = scalar_lea.sflag [#allocation7], %s510
        %s512 = sand.u32 %s42, 1
        %s513 = smul.addr %s512, 4
        %s514 = scalar_lea.vmem [#allocation6], %s513
        %p515 = pneg %p55
        %p516 = pneg %p52
        %s517 = sand.u32 %s34, 1
        %s518 = scalar_lea.sflag [#allocation10], %s517
        %s519 = sand.u32 %s68, 1
        %s520 = smul.addr %s519, 4
        %s521 = scalar_lea.vmem [#allocation9], %s520
        %p522 = pneg %p81
        %p523 = pneg %p78
        %s524 = sand.u32 %s34, 1
        %s525 = scalar_lea.sflag [#allocation10], %s524
        %s526 = sand.u32 %s94, 1
        %s527 = smul.addr %s526, 4
        %s528 = scalar_lea.vmem [#allocation11], %s527
        %p529 = pneg %p107
        %p530 = pneg %p104
        %p531 = pneg %p128
        %p532 = pneg %p125
        %p533 = pneg %p149
        %p534 = pneg %p146
        %p535 = pneg %p170
        %p536 = pneg %p167
        %p537 = pneg %p191
        %p538 = pneg %p188
        %p539 = pneg %p212
        %p540 = pneg %p209
        %p541 = pneg %p233
        %p542 = pneg %p230
        %p543 = pneg %p254
        %p544 = pneg %p251
        %p545 = pneg %p275
        %p546 = pneg %p272
        %p547 = pneg %p301
        %p548 = pneg %p298
        %s549 = sand.u32 %s288, 1
        %s550 = scalar_lea.sflag [#allocation8], %s549
        %s551 = sand.u32 %s288, 1
        %s552 = smul.addr %s551, 8
        %s553 = scalar_lea.vmem [#allocation21], %s552
        %v555 = vld [vmem:[%s463] sm:$0xf]
        %v556 = vld [vmem:[%s472] sm:$0xf]
        %v557 = vld [vmem:[%s481] sm:$0xf]
        %v558 = vld [vmem:[#allocation12] sm:$0xf]
        %v559 = vld [vmem:[#allocation12 + $0x4] sm:$0xf]
        %v560 = vld [vmem:[#allocation12 + $0x8] sm:$0xf]
        %v561 = vld [vmem:[#allocation12 + $0xc] sm:$0xf]
        %v562 = vld [vmem:[#allocation14] sm:$0x1]
        %v564 = vlaneseq
        %v565 = vshrl.u32 %v564, 7
        %v566 = vsub.s32 0, %v565
        %v567 = vrot.slane %v562, %v566
        %v573 = vunpack.c.l.b16 %v558
        %v574 = vunpack.c.l.b16 %v559
        %v575 = vunpack.c.l.b16 %v560
        %v576 = vunpack.c.l.b16 %v561
        %v577 = vpack.c.b16 %v574, %v573
        %v578 = vpack.c.b16 %v576, %v575
        %vm581 = vcmask 261120
        %v583 = vsel %vm581, %v555, 0
        %585 = vmatprep.subr.bf16.mxu0 0
        %586 = vmatpush1.bf16.msra.mxu0 0
        %587 = vmatprep.subr.bf16.mxu0 0
        %588 = vmatpush1.bf16.msra.mxu0 0
        %589 = vmatprep.subr.bf16.mxu0 0
        %590 = vmatpush1.bf16.msra.mxu0 0
        %591 = vmatprep.subr.bf16.mxu0 0
        %592 = vmatpush1.bf16.msra.mxu0 0
        %593 = vmatprep.subr.bf16.mxu0 0
        %594 = vmatpush1.bf16.msra.mxu0 0
        %595 = vmatprep.subr.bf16.mxu0 0
        %596 = vmatpush1.bf16.msra.mxu0 0
        %597 = vmatprep.subr.bf16.mxu0 0
        %598 = vmatpush1.bf16.msra.mxu0 %v578
        %599 = vmatprep.subr.bf16.mxu0 0
        %600 = vmatpush1.bf16.msra.mxu0 %v577
        %601 = vmatprep.subr.bf16.mxu0 0
        %602 = vmatpush2.bf16.msra.mxu0 0
        %603 = vmatprep.subr.bf16.mxu0 0
        %604 = vmatpush2.bf16.msra.mxu0 0
        %605 = vmatprep.subr.bf16.mxu0 0
        %606 = vmatpush2.bf16.msra.mxu0 0
        %607 = vmatprep.subr.bf16.mxu0 0
        %608 = vmatpush2.bf16.msra.mxu0 0
        %609 = vmatprep.subr.bf16.mxu0 0
        %610 = vmatpush2.bf16.msra.mxu0 0
        %611 = vmatprep.subr.bf16.mxu0 0
        %612 = vmatpush2.bf16.msra.mxu0 0
        %613 = vmatprep.subr.bf16.mxu0 0
        %614 = vmatpush2.bf16.msra.mxu0 0
        %615 = vmatprep.subr.bf16.mxu0 0
        %616 = vmatpush2.bf16.msra.mxu0 0
        %617 = vmatprep.mubr.bf16.mxu0 0
        %618 = vmatmul.mubr.bf16.gmra.mxu0 %v583
        %v619 = vpop.f32.mrf.mxu0
        %v620 = vadd.f32 %v567, %v619
        %v621 = vpop.f32.mrf.mxu0
        %v622 = vpop.f32.mrf.mxu0
        %v623 = vpop.f32.mrf.mxu0
        %624 = vdwg.mxu0
        %v625 = vmul.f32 %v620, 0.35355338
        %626 = vst.msk [vmem:[#allocation2] sm:$0xff] %vm581, %v625
        %v627 = vld [vmem:[#allocation15] sm:$0xf]
        %v628 = vld [vmem:[#allocation15 + $0x4] sm:$0xf]
        %v629 = vld [vmem:[#allocation15 + $0x8] sm:$0xf]
        %v630 = vld [vmem:[#allocation15 + $0xc] sm:$0xf]
        %v631 = vld [vmem:[#allocation17] sm:$0x1]
        %v633 = vlaneseq
        %v634 = vshrl.u32 %v633, 7
        %v635 = vsub.s32 0, %v634
        %v636 = vrot.slane %v631, %v635
        %v642 = vunpack.c.l.b16 %v627
        %v643 = vunpack.c.l.b16 %v628
        %v644 = vunpack.c.l.b16 %v629
        %v645 = vunpack.c.l.b16 %v630
        %v646 = vpack.c.b16 %v643, %v642
        %v647 = vpack.c.b16 %v645, %v644
        %v651 = vsel %vm581, %v556, 0
        %653 = vmatprep.subr.bf16.mxu0 0
        %654 = vmatpush1.bf16.msra.mxu0 0
        %655 = vmatprep.subr.bf16.mxu0 0
        %656 = vmatpush1.bf16.msra.mxu0 0
        %657 = vmatprep.subr.bf16.mxu0 0
        %658 = vmatpush1.bf16.msra.mxu0 0
        %659 = vmatprep.subr.bf16.mxu0 0
        %660 = vmatpush1.bf16.msra.mxu0 0
        %661 = vmatprep.subr.bf16.mxu0 0
        %662 = vmatpush1.bf16.msra.mxu0 0
        %663 = vmatprep.subr.bf16.mxu0 0
        %664 = vmatpush1.bf16.msra.mxu0 0
        %665 = vmatprep.subr.bf16.mxu0 0
        %666 = vmatpush1.bf16.msra.mxu0 %v647
        %667 = vmatprep.subr.bf16.mxu0 0
        %668 = vmatpush1.bf16.msra.mxu0 %v646
        %669 = vmatprep.subr.bf16.mxu0 0
        %670 = vmatpush2.bf16.msra.mxu0 0
        %671 = vmatprep.subr.bf16.mxu0 0
        %672 = vmatpush2.bf16.msra.mxu0 0
        %673 = vmatprep.subr.bf16.mxu0 0
        %674 = vmatpush2.bf16.msra.mxu0 0
        %675 = vmatprep.subr.bf16.mxu0 0
        %676 = vmatpush2.bf16.msra.mxu0 0
        %677 = vmatprep.subr.bf16.mxu0 0
        %678 = vmatpush2.bf16.msra.mxu0 0
        %679 = vmatprep.subr.bf16.mxu0 0
        %680 = vmatpush2.bf16.msra.mxu0 0
        %681 = vmatprep.subr.bf16.mxu0 0
        %682 = vmatpush2.bf16.msra.mxu0 0
        %683 = vmatprep.subr.bf16.mxu0 0
        %684 = vmatpush2.bf16.msra.mxu0 0
        %685 = vmatprep.mubr.bf16.mxu0 0
        %686 = vmatmul.mubr.bf16.gmra.mxu0 %v651
        %v687 = vpop.f32.mrf.mxu0
        %v688 = vadd.f32 %v636, %v687
        %v689 = vpop.f32.mrf.mxu0
        %v690 = vpop.f32.mrf.mxu0
        %v691 = vpop.f32.mrf.mxu0
        %692 = vdwg.mxu0
        %693 = vst.msk [vmem:[#allocation3] sm:$0xff] %vm581, %v688
        %v694 = vld [vmem:[#allocation18] sm:$0xf]
        %v695 = vld [vmem:[#allocation18 + $0x4] sm:$0xf]
        %v696 = vld [vmem:[#allocation18 + $0x8] sm:$0xf]
        %v697 = vld [vmem:[#allocation18 + $0xc] sm:$0xf]
        %v698 = vld [vmem:[#allocation20] sm:$0x1]
        %v700 = vlaneseq
        %v701 = vshrl.u32 %v700, 7
        %v702 = vsub.s32 0, %v701
        %v703 = vrot.slane %v698, %v702
        %v709 = vunpack.c.l.b16 %v694
        %v710 = vunpack.c.l.b16 %v695
        %v711 = vunpack.c.l.b16 %v696
        %v712 = vunpack.c.l.b16 %v697
        %v713 = vpack.c.b16 %v710, %v709
        %v714 = vpack.c.b16 %v712, %v711
        %v718 = vsel %vm581, %v557, 0
        %720 = vmatprep.subr.bf16.mxu0 0
        %721 = vmatpush1.bf16.msra.mxu0 0
        %722 = vmatprep.subr.bf16.mxu0 0
        %723 = vmatpush1.bf16.msra.mxu0 0
        %724 = vmatprep.subr.bf16.mxu0 0
        %725 = vmatpush1.bf16.msra.mxu0 0
        %726 = vmatprep.subr.bf16.mxu0 0
        %727 = vmatpush1.bf16.msra.mxu0 0
        %728 = vmatprep.subr.bf16.mxu0 0
        %729 = vmatpush1.bf16.msra.mxu0 0
        %730 = vmatprep.subr.bf16.mxu0 0
        %731 = vmatpush1.bf16.msra.mxu0 0
        %732 = vmatprep.subr.bf16.mxu0 0
        %733 = vmatpush1.bf16.msra.mxu0 %v714
        %734 = vmatprep.subr.bf16.mxu0 0
        %735 = vmatpush1.bf16.msra.mxu0 %v713
        %736 = vmatprep.subr.bf16.mxu0 0
        %737 = vmatpush2.bf16.msra.mxu0 0
        %738 = vmatprep.subr.bf16.mxu0 0
        %739 = vmatpush2.bf16.msra.mxu0 0
        %740 = vmatprep.subr.bf16.mxu0 0
        %741 = vmatpush2.bf16.msra.mxu0 0
        %742 = vmatprep.subr.bf16.mxu0 0
        %743 = vmatpush2.bf16.msra.mxu0 0
        %744 = vmatprep.subr.bf16.mxu0 0
        %745 = vmatpush2.bf16.msra.mxu0 0
        %746 = vmatprep.subr.bf16.mxu0 0
        %747 = vmatpush2.bf16.msra.mxu0 0
        %748 = vmatprep.subr.bf16.mxu0 0
        %749 = vmatpush2.bf16.msra.mxu0 0
        %750 = vmatprep.subr.bf16.mxu0 0
        %751 = vmatpush2.bf16.msra.mxu0 0
        %752 = vmatprep.mubr.bf16.mxu0 0
        %753 = vmatmul.mubr.bf16.gmra.mxu0 %v718
        %v754 = vpop.f32.mrf.mxu0
        %v755 = vadd.f32 %v703, %v754
        %v756 = vpop.f32.mrf.mxu0
        %v757 = vpop.f32.mrf.mxu0
        %v758 = vpop.f32.mrf.mxu0
        %759 = vdwg.mxu0
        %760 = vst.msk [vmem:[#allocation4] sm:$0xff] %vm581, %v755
        %v761 = vld [vmem:[#allocation2] sm:$0xff]
        %v762 = vpack.c.bf16 %v761, %v761
        %v763 = vld [vmem:[#allocation3] sm:$0xff]
        %v764 = vpack.c.bf16 %v763, %v763
        %v765 = vld [vmem:[#allocation4] sm:$0xff]
        %v766 = vpack.c.bf16 %v765, %v765
        %vm767 = vcmask 64512
        %v769 = vsel %vm767, %v762, 0
        %v772 = vsel %vm767, %v764, 0
        %774 = vmatprep.subr.bf16.mxu0 0
        %775 = vmatpush1.bf16.xpose.msra.mxu0 0
        %776 = vmatprep.subr.bf16.mxu0 0
        %777 = vmatpush1.bf16.xpose.msra.mxu0 0
        %778 = vmatprep.subr.bf16.mxu0 0
        %779 = vmatpush1.bf16.xpose.msra.mxu0 0
        %780 = vmatprep.subr.bf16.mxu0 0
        %781 = vmatpush1.bf16.xpose.msra.mxu0 0
        %782 = vmatprep.subr.bf16.mxu0 0
        %783 = vmatpush1.bf16.xpose.msra.mxu0 0
        %784 = vmatprep.subr.bf16.mxu0 0
        %785 = vmatpush1.bf16.xpose.msra.mxu0 0
        %786 = vmatprep.subr.bf16.mxu0 0
        %787 = vmatpush1.bf16.xpose.msra.mxu0 0
        %788 = vmatprep.subr.bf16.mxu0 0
        %789 = vmatpush1.bf16.xpose.msra.mxu0 %v772
        %790 = vmatprep.subr.bf16.mxu0 0
        %791 = vmatpush2.bf16.xpose.msra.mxu0 0
        %792 = vmatprep.subr.bf16.mxu0 0
        %793 = vmatpush2.bf16.xpose.msra.mxu0 0
        %794 = vmatprep.subr.bf16.mxu0 0
        %795 = vmatpush2.bf16.xpose.msra.mxu0 0
        %796 = vmatprep.subr.bf16.mxu0 0
        %797 = vmatpush2.bf16.xpose.msra.mxu0 0
        %798 = vmatprep.subr.bf16.mxu0 0
        %799 = vmatpush2.bf16.xpose.msra.mxu0 0
        %800 = vmatprep.subr.bf16.mxu0 0
        %801 = vmatpush2.bf16.xpose.msra.mxu0 0
        %802 = vmatprep.subr.bf16.mxu0 0
        %803 = vmatpush2.bf16.xpose.msra.mxu0 0
        %804 = vmatprep.subr.bf16.mxu0 0
        %805 = vmatpush2.bf16.xpose.msra.mxu0 0
        %806 = vmatprep.mubr.bf16.mxu0 0
        %807 = vmatmul.mubr.bf16.gmra.mxu0 %v769
        %v808 = vpop.f32.mrf.mxu0
        %v809 = vadd.f32 0.0, %v808
        %v810 = vpop.f32.mrf.mxu0
        %v811 = vpop.f32.mrf.mxu0
        %v812 = vpop.f32.mrf.mxu0
        %813 = vdwg.mxu0
        %v814 = vsel %vm767, %v809, -inf
        %815 = vmax.xlane.f32.xlu0 %v814
        %v816 = vpop.xlane.xlu0 %815
        %v817 = vsub.f32 %v809, %v816
        %v818 = vmul.f32 %v817, 1.442695
        %v819 = vpow.pop %v818
        %v820 = vsel %vm767, %v819, 0.0
        %821 = vadd.xlane.f32.xlu0 %v820
        %v822 = vpop.xlane.xlu0 %821
        %v823 = vrcp.pop %v822
        %v824 = vmul.f32 %v819, %v823
        %v825 = vpack.c.bf16 %v824, %v824
        %v827 = vsel %vm767, %v825, 0
        %vm829 = vcmask 1043456
        %v831 = vsel %vm829, %v766, 0
        %833 = vmatprep.subr.bf16.mxu0 0
        %834 = vmatpush1.bf16.msra.mxu0 0
        %835 = vmatprep.subr.bf16.mxu0 0
        %836 = vmatpush1.bf16.msra.mxu0 0
        %837 = vmatprep.subr.bf16.mxu0 0
        %838 = vmatpush1.bf16.msra.mxu0 0
        %839 = vmatprep.subr.bf16.mxu0 0
        %840 = vmatpush1.bf16.msra.mxu0 0
        %841 = vmatprep.subr.bf16.mxu0 0
        %842 = vmatpush1.bf16.msra.mxu0 0
        %843 = vmatprep.subr.bf16.mxu0 0
        %844 = vmatpush1.bf16.msra.mxu0 0
        %845 = vmatprep.subr.bf16.mxu0 0
        %846 = vmatpush1.bf16.msra.mxu0 0
        %847 = vmatprep.subr.bf16.mxu0 0
        %848 = vmatpush1.bf16.msra.mxu0 %v831
        %849 = vmatprep.subr.bf16.mxu0 0
        %850 = vmatpush2.bf16.msra.mxu0 0
        %851 = vmatprep.subr.bf16.mxu0 0
        %852 = vmatpush2.bf16.msra.mxu0 0
        %853 = vmatprep.subr.bf16.mxu0 0
        %854 = vmatpush2.bf16.msra.mxu0 0
        %855 = vmatprep.subr.bf16.mxu0 0
        %856 = vmatpush2.bf16.msra.mxu0 0
        %857 = vmatprep.subr.bf16.mxu0 0
        %858 = vmatpush2.bf16.msra.mxu0 0
        %859 = vmatprep.subr.bf16.mxu0 0
        %860 = vmatpush2.bf16.msra.mxu0 0
        %861 = vmatprep.subr.bf16.mxu0 0
        %862 = vmatpush2.bf16.msra.mxu0 0
        %863 = vmatprep.subr.bf16.mxu0 0
        %864 = vmatpush2.bf16.msra.mxu0 0
        %865 = vmatprep.mubr.bf16.mxu0 0
        %866 = vmatmul.mubr.bf16.gmra.mxu0 %v827
        %v867 = vpop.f32.mrf.mxu0
        %v868 = vadd.f32 0.0, %v867
        %v869 = vpop.f32.mrf.mxu0
        %v870 = vpop.f32.mrf.mxu0
        %v871 = vpop.f32.mrf.mxu0
        %872 = vdwg.mxu0
        %873 = vst.msk [vmem:[#allocation5] sm:$0xff] %vm767, %v868
        %v874 = vld [vmem:[#allocation2] sm:$0xff]
        %v875 = vpack.c.bf16 %v874, %v874
        %v876 = vld [vmem:[#allocation3] sm:$0xff]
        %v877 = vpack.c.bf16 %v876, %v876
        %v878 = vld [vmem:[#allocation4] sm:$0xff]
        %v879 = vpack.c.bf16 %v878, %v878
        %881 = vrot.lane.b32.xlu0 %v875, 120
        %v882 = vpop.permute.xlu0 %881
        %884 = vrot.lane.b32.xlu0 %v877, 120
        %v885 = vpop.permute.xlu0 %884
        %v887 = vsel %vm767, %v882, 0
        %v890 = vsel %vm767, %v885, 0
        %892 = vmatprep.subr.bf16.mxu0 0
        %893 = vmatpush1.bf16.xpose.msra.mxu0 0
        %894 = vmatprep.subr.bf16.mxu0 0
        %895 = vmatpush1.bf16.xpose.msra.mxu0 0
        %896 = vmatprep.subr.bf16.mxu0 0
        %897 = vmatpush1.bf16.xpose.msra.mxu0 0
        %898 = vmatprep.subr.bf16.mxu0 0
        %899 = vmatpush1.bf16.xpose.msra.mxu0 0
        %900 = vmatprep.subr.bf16.mxu0 0
        %901 = vmatpush1.bf16.xpose.msra.mxu0 0
        %902 = vmatprep.subr.bf16.mxu0 0
        %903 = vmatpush1.bf16.xpose.msra.mxu0 0
        %904 = vmatprep.subr.bf16.mxu0 0
        %905 = vmatpush1.bf16.xpose.msra.mxu0 0
        %906 = vmatprep.subr.bf16.mxu0 0
        %907 = vmatpush1.bf16.xpose.msra.mxu0 %v890
        %908 = vmatprep.subr.bf16.mxu0 0
        %909 = vmatpush2.bf16.xpose.msra.mxu0 0
        %910 = vmatprep.subr.bf16.mxu0 0
        %911 = vmatpush2.bf16.xpose.msra.mxu0 0
        %912 = vmatprep.subr.bf16.mxu0 0
        %913 = vmatpush2.bf16.xpose.msra.mxu0 0
        %914 = vmatprep.subr.bf16.mxu0 0
        %915 = vmatpush2.bf16.xpose.msra.mxu0 0
        %916 = vmatprep.subr.bf16.mxu0 0
        %917 = vmatpush2.bf16.xpose.msra.mxu0 0
        %918 = vmatprep.subr.bf16.mxu0 0
        %919 = vmatpush2.bf16.xpose.msra.mxu0 0
        %920 = vmatprep.subr.bf16.mxu0 0
        %921 = vmatpush2.bf16.xpose.msra.mxu0 0
        %922 = vmatprep.subr.bf16.mxu0 0
        %923 = vmatpush2.bf16.xpose.msra.mxu0 0
        %924 = vmatprep.mubr.bf16.mxu0 0
        %925 = vmatmul.mubr.bf16.gmra.mxu0 %v887
        %v926 = vpop.f32.mrf.mxu0
        %v927 = vadd.f32 0.0, %v926
        %v928 = vpop.f32.mrf.mxu0
        %v929 = vpop.f32.mrf.mxu0
        %v930 = vpop.f32.mrf.mxu0
        %931 = vdwg.mxu0
        %v932 = vsel %vm767, %v927, -inf
        %933 = vmax.xlane.f32.xlu0 %v932
        %v934 = vpop.xlane.xlu0 %933
        %v935 = vsub.f32 %v927, %v934
        %v936 = vmul.f32 %v935, 1.442695
        %v937 = vpow.pop %v936
        %v938 = vsel %vm767, %v937, 0.0
        %939 = vadd.xlane.f32.xlu0 %v938
        %v940 = vpop.xlane.xlu0 %939
        %v941 = vrcp.pop %v940
        %v942 = vmul.f32 %v937, %v941
        %v943 = vpack.c.bf16 %v942, %v942
        %945 = vrot.lane.b32.xlu0 %v879, 120
        %v946 = vpop.permute.xlu0 %945
        %v948 = vsel %vm767, %v943, 0
        %v951 = vsel %vm829, %v946, 0
        %953 = vmatprep.subr.bf16.mxu0 0
        %954 = vmatpush1.bf16.msra.mxu0 0
        %955 = vmatprep.subr.bf16.mxu0 0
        %956 = vmatpush1.bf16.msra.mxu0 0
        %957 = vmatprep.subr.bf16.mxu0 0
        %958 = vmatpush1.bf16.msra.mxu0 0
        %959 = vmatprep.subr.bf16.mxu0 0
        %960 = vmatpush1.bf16.msra.mxu0 0
        %961 = vmatprep.subr.bf16.mxu0 0
        %962 = vmatpush1.bf16.msra.mxu0 0
        %963 = vmatprep.subr.bf16.mxu0 0
        %964 = vmatpush1.bf16.msra.mxu0 0
        %965 = vmatprep.subr.bf16.mxu0 0
        %966 = vmatpush1.bf16.msra.mxu0 0
        %967 = vmatprep.subr.bf16.mxu0 0
        %968 = vmatpush1.bf16.msra.mxu0 %v951
        %969 = vmatprep.subr.bf16.mxu0 0
        %970 = vmatpush2.bf16.msra.mxu0 0
        %971 = vmatprep.subr.bf16.mxu0 0
        %972 = vmatpush2.bf16.msra.mxu0 0
        %973 = vmatprep.subr.bf16.mxu0 0
        %974 = vmatpush2.bf16.msra.mxu0 0
        %975 = vmatprep.subr.bf16.mxu0 0
        %976 = vmatpush2.bf16.msra.mxu0 0
        %977 = vmatprep.subr.bf16.mxu0 0
        %978 = vmatpush2.bf16.msra.mxu0 0
        %979 = vmatprep.subr.bf16.mxu0 0
        %980 = vmatpush2.bf16.msra.mxu0 0
        %981 = vmatprep.subr.bf16.mxu0 0
        %982 = vmatpush2.bf16.msra.mxu0 0
        %983 = vmatprep.subr.bf16.mxu0 0
        %984 = vmatpush2.bf16.msra.mxu0 0
        %985 = vmatprep.mubr.bf16.mxu0 0
        %986 = vmatmul.mubr.bf16.gmra.mxu0 %v948
        %v987 = vpop.f32.mrf.mxu0
        %v988 = vadd.f32 0.0, %v987
        %v989 = vpop.f32.mrf.mxu0
        %v990 = vpop.f32.mrf.mxu0
        %v991 = vpop.f32.mrf.mxu0
        %992 = vdwg.mxu0
        %994 = vrot.lane.b32.xlu0 %v988, 8
        %v995 = vpop.permute.xlu0 %994
        %vm997 = vcmask 130112
        %998 = vst.msk [vmem:[#allocation5] sm:$0xff] %vm997, %v995
        %v999 = vld [vmem:[#allocation2] sm:$0xff]
        %v1000 = vpack.c.bf16 %v999, %v999
        %v1001 = vld [vmem:[#allocation3] sm:$0xff]
        %v1002 = vpack.c.bf16 %v1001, %v1001
        %v1003 = vld [vmem:[#allocation4] sm:$0xff]
        %v1004 = vpack.c.bf16 %v1003, %v1003
        %1006 = vrot.lane.b32.xlu0 %v1000, 112
        %v1007 = vpop.permute.xlu0 %1006
        %1009 = vrot.lane.b32.xlu0 %v1002, 112
        %v1010 = vpop.permute.xlu0 %1009
        %v1012 = vsel %vm767, %v1007, 0
        %v1015 = vsel %vm767, %v1010, 0
        %1017 = vmatprep.subr.bf16.mxu0 0
        %1018 = vmatpush1.bf16.xpose.msra.mxu0 0
        %1019 = vmatprep.subr.bf16.mxu0 0
        %1020 = vmatpush1.bf16.xpose.msra.mxu0 0
        %1021 = vmatprep.subr.bf16.mxu0 0
        %1022 = vmatpush1.bf16.xpose.msra.mxu0 0
        %1023 = vmatprep.subr.bf16.mxu0 0
        %1024 = vmatpush1.bf16.xpose.msra.mxu0 0
        %1025 = vmatprep.subr.bf16.mxu0 0
        %1026 = vmatpush1.bf16.xpose.msra.mxu0 0
        %1027 = vmatprep.subr.bf16.mxu0 0
        %1028 = vmatpush1.bf16.xpose.msra.mxu0 0
        %1029 = vmatprep.subr.bf16.mxu0 0
        %1030 = vmatpush1.bf16.xpose.msra.mxu0 0
        %1031 = vmatprep.subr.bf16.mxu0 0
        %1032 = vmatpush1.bf16.xpose.msra.mxu0 %v1015
        %1033 = vmatprep.subr.bf16.mxu0 0
        %1034 = vmatpush2.bf16.xpose.msra.mxu0 0
        %1035 = vmatprep.subr.bf16.mxu0 0
        %1036 = vmatpush2.bf16.xpose.msra.mxu0 0
        %1037 = vmatprep.subr.bf16.mxu0 0
        %1038 = vmatpush2.bf16.xpose.msra.mxu0 0
        %1039 = vmatprep.subr.bf16.mxu0 0
        %1040 = vmatpush2.bf16.xpose.msra.mxu0 0
        %1041 = vmatprep.subr.bf16.mxu0 0
        %1042 = vmatpush2.bf16.xpose.msra.mxu0 0
        %1043 = vmatprep.subr.bf16.mxu0 0
        %1044 = vmatpush2.bf16.xpose.msra.mxu0 0
        %1045 = vmatprep.subr.bf16.mxu0 0
        %1046 = vmatpush2.bf16.xpose.msra.mxu0 0
        %1047 = vmatprep.subr.bf16.mxu0 0
        %1048 = vmatpush2.bf16.xpose.msra.mxu0 0
        %1049 = vmatprep.mubr.bf16.mxu0 0
        %1050 = vmatmul.mubr.bf16.gmra.mxu0 %v1012
        %v1051 = vpop.f32.mrf.mxu0
        %v1052 = vadd.f32 0.0, %v1051
        %v1053 = vpop.f32.mrf.mxu0
        %v1054 = vpop.f32.mrf.mxu0
        %v1055 = vpop.f32.mrf.mxu0
        %1056 = vdwg.mxu0
        %v1057 = vsel %vm767, %v1052, -inf
        %1058 = vmax.xlane.f32.xlu0 %v1057
        %v1059 = vpop.xlane.xlu0 %1058
        %v1060 = vsub.f32 %v1052, %v1059
        %v1061 = vmul.f32 %v1060, 1.442695
        %v1062 = vpow.pop %v1061
        %v1063 = vsel %vm767, %v1062, 0.0
        %1064 = vadd.xlane.f32.xlu0 %v1063
        %v1065 = vpop.xlane.xlu0 %1064
        %v1066 = vrcp.pop %v1065
        %v1067 = vmul.f32 %v1062, %v1066
        %v1068 = vpack.c.bf16 %v1067, %v1067
        %1070 = vrot.lane.b32.xlu0 %v1004, 112
        %v1071 = vpop.permute.xlu0 %1070
        %v1073 = vsel %vm767, %v1068, 0
        %v1076 = vsel %vm829, %v1071, 0
        %1078 = vmatprep.subr.bf16.mxu0 0
        %1079 = vmatpush1.bf16.msra.mxu0 0
        %1080 = vmatprep.subr.bf16.mxu0 0
        %1081 = vmatpush1.bf16.msra.mxu0 0
        %1082 = vmatprep.subr.bf16.mxu0 0
        %1083 = vmatpush1.bf16.msra.mxu0 0
        %1084 = vmatprep.subr.bf16.mxu0 0
        %1085 = vmatpush1.bf16.msra.mxu0 0
        %1086 = vmatprep.subr.bf16.mxu0 0
        %1087 = vmatpush1.bf16.msra.mxu0 0
        %1088 = vmatprep.subr.bf16.mxu0 0
        %1089 = vmatpush1.bf16.msra.mxu0 0
        %1090 = vmatprep.subr.bf16.mxu0 0
        %1091 = vmatpush1.bf16.msra.mxu0 0
        %1092 = vmatprep.subr.bf16.mxu0 0
        %1093 = vmatpush1.bf16.msra.mxu0 %v1076
        %1094 = vmatprep.subr.bf16.mxu0 0
        %1095 = vmatpush2.bf16.msra.mxu0 0
        %1096 = vmatprep.subr.bf16.mxu0 0
        %1097 = vmatpush2.bf16.msra.mxu0 0
        %1098 = vmatprep.subr.bf16.mxu0 0
        %1099 = vmatpush2.bf16.msra.mxu0 0
        %1100 = vmatprep.subr.bf16.mxu0 0
        %1101 = vmatpush2.bf16.msra.mxu0 0
        %1102 = vmatprep.subr.bf16.mxu0 0
        %1103 = vmatpush2.bf16.msra.mxu0 0
        %1104 = vmatprep.subr.bf16.mxu0 0
        %1105 = vmatpush2.bf16.msra.mxu0 0
        %1106 = vmatprep.subr.bf16.mxu0 0
        %1107 = vmatpush2.bf16.msra.mxu0 0
        %1108 = vmatprep.subr.bf16.mxu0 0
        %1109 = vmatpush2.bf16.msra.mxu0 0
        %1110 = vmatprep.mubr.bf16.mxu0 0
        %1111 = vmatmul.mubr.bf16.gmra.mxu0 %v1073
        %v1112 = vpop.f32.mrf.mxu0
        %v1113 = vadd.f32 0.0, %v1112
        %v1114 = vpop.f32.mrf.mxu0
        %v1115 = vpop.f32.mrf.mxu0
        %v1116 = vpop.f32.mrf.mxu0
        %1117 = vdwg.mxu0
        %1119 = vrot.lane.b32.xlu0 %v1113, 16
        %v1120 = vpop.permute.xlu0 %1119
        %vm1122 = vcmask 195712
        %1123 = vst.msk [vmem:[#allocation5] sm:$0xff] %vm1122, %v1120
        %v1124 = vld [vmem:[#allocation2] sm:$0xff]
        %v1125 = vpack.c.bf16 %v1124, %v1124
        %v1126 = vld [vmem:[#allocation3] sm:$0xff]
        %v1127 = vpack.c.bf16 %v1126, %v1126
        %v1128 = vld [vmem:[#allocation4] sm:$0xff]
        %v1129 = vpack.c.bf16 %v1128, %v1128
        %1131 = vrot.lane.b32.xlu0 %v1125, 104
        %v1132 = vpop.permute.xlu0 %1131
        %1134 = vrot.lane.b32.xlu0 %v1127, 104
        %v1135 = vpop.permute.xlu0 %1134
        %v1137 = vsel %vm767, %v1132, 0
        %v1140 = vsel %vm767, %v1135, 0
        %1142 = vmatprep.subr.bf16.mxu0 0
        %1143 = vmatpush1.bf16.xpose.msra.mxu0 0
        %1144 = vmatprep.subr.bf16.mxu0 0
        %1145 = vmatpush1.bf16.xpose.msra.mxu0 0
        %1146 = vmatprep.subr.bf16.mxu0 0
        %1147 = vmatpush1.bf16.xpose.msra.mxu0 0
        %1148 = vmatprep.subr.bf16.mxu0 0
        %1149 = vmatpush1.bf16.xpose.msra.mxu0 0
        %1150 = vmatprep.subr.bf16.mxu0 0
        %1151 = vmatpush1.bf16.xpose.msra.mxu0 0
        %1152 = vmatprep.subr.bf16.mxu0 0
        %1153 = vmatpush1.bf16.xpose.msra.mxu0 0
        %1154 = vmatprep.subr.bf16.mxu0 0
        %1155 = vmatpush1.bf16.xpose.msra.mxu0 0
        %1156 = vmatprep.subr.bf16.mxu0 0
        %1157 = vmatpush1.bf16.xpose.msra.mxu0 %v1140
        %1158 = vmatprep.subr.bf16.mxu0 0
        %1159 = vmatpush2.bf16.xpose.msra.mxu0 0
        %1160 = vmatprep.subr.bf16.mxu0 0
        %1161 = vmatpush2.bf16.xpose.msra.mxu0 0
        %1162 = vmatprep.subr.bf16.mxu0 0
        %1163 = vmatpush2.bf16.xpose.msra.mxu0 0
        %1164 = vmatprep.subr.bf16.mxu0 0
        %1165 = vmatpush2.bf16.xpose.msra.mxu0 0
        %1166 = vmatprep.subr.bf16.mxu0 0
        %1167 = vmatpush2.bf16.xpose.msra.mxu0 0
        %1168 = vmatprep.subr.bf16.mxu0 0
        %1169 = vmatpush2.bf16.xpose.msra.mxu0 0
        %1170 = vmatprep.subr.bf16.mxu0 0
        %1171 = vmatpush2.bf16.xpose.msra.mxu0 0
        %1172 = vmatprep.subr.bf16.mxu0 0
        %1173 = vmatpush2.bf16.xpose.msra.mxu0 0
        %1174 = vmatprep.mubr.bf16.mxu0 0
        %1175 = vmatmul.mubr.bf16.gmra.mxu0 %v1137
        %v1176 = vpop.f32.mrf.mxu0
        %v1177 = vadd.f32 0.0, %v1176
        %v1178 = vpop.f32.mrf.mxu0
        %v1179 = vpop.f32.mrf.mxu0
        %v1180 = vpop.f32.mrf.mxu0
        %1181 = vdwg.mxu0
        %v1182 = vsel %vm767, %v1177, -inf
        %1183 = vmax.xlane.f32.xlu0 %v1182
        %v1184 = vpop.xlane.xlu0 %1183
        %v1185 = vsub.f32 %v1177, %v1184
        %v1186 = vmul.f32 %v1185, 1.442695
        %v1187 = vpow.pop %v1186
        %v1188 = vsel %vm767, %v1187, 0.0
        %1189 = vadd.xlane.f32.xlu0 %v1188
        %v1190 = vpop.xlane.xlu0 %1189
        %v1191 = vrcp.pop %v1190
        %v1192 = vmul.f32 %v1187, %v1191
        %v1193 = vpack.c.bf16 %v1192, %v1192
        %1195 = vrot.lane.b32.xlu0 %v1129, 104
        %v1196 = vpop.permute.xlu0 %1195
        %v1198 = vsel %vm767, %v1193, 0
        %v1201 = vsel %vm829, %v1196, 0
        %1203 = vmatprep.subr.bf16.mxu0 0
        %1204 = vmatpush1.bf16.msra.mxu0 0
        %1205 = vmatprep.subr.bf16.mxu0 0
        %1206 = vmatpush1.bf16.msra.mxu0 0
        %1207 = vmatprep.subr.bf16.mxu0 0
        %1208 = vmatpush1.bf16.msra.mxu0 0
        %1209 = vmatprep.subr.bf16.mxu0 0
        %1210 = vmatpush1.bf16.msra.mxu0 0
        %1211 = vmatprep.subr.bf16.mxu0 0
        %1212 = vmatpush1.bf16.msra.mxu0 0
        %1213 = vmatprep.subr.bf16.mxu0 0
        %1214 = vmatpush1.bf16.msra.mxu0 0
        %1215 = vmatprep.subr.bf16.mxu0 0
        %1216 = vmatpush1.bf16.msra.mxu0 0
        %1217 = vmatprep.subr.bf16.mxu0 0
        %1218 = vmatpush1.bf16.msra.mxu0 %v1201
        %1219 = vmatprep.subr.bf16.mxu0 0
        %1220 = vmatpush2.bf16.msra.mxu0 0
        %1221 = vmatprep.subr.bf16.mxu0 0
        %1222 = vmatpush2.bf16.msra.mxu0 0
        %1223 = vmatprep.subr.bf16.mxu0 0
        %1224 = vmatpush2.bf16.msra.mxu0 0
        %1225 = vmatprep.subr.bf16.mxu0 0
        %1226 = vmatpush2.bf16.msra.mxu0 0
        %1227 = vmatprep.subr.bf16.mxu0 0
        %1228 = vmatpush2.bf16.msra.mxu0 0
        %1229 = vmatprep.subr.bf16.mxu0 0
        %1230 = vmatpush2.bf16.msra.mxu0 0
        %1231 = vmatprep.subr.bf16.mxu0 0
        %1232 = vmatpush2.bf16.msra.mxu0 0
        %1233 = vmatprep.subr.bf16.mxu0 0
        %1234 = vmatpush2.bf16.msra.mxu0 0
        %1235 = vmatprep.mubr.bf16.mxu0 0
        %1236 = vmatmul.mubr.bf16.gmra.mxu0 %v1198
        %v1237 = vpop.f32.mrf.mxu0
        %v1238 = vadd.f32 0.0, %v1237
        %v1239 = vpop.f32.mrf.mxu0
        %v1240 = vpop.f32.mrf.mxu0
        %v1241 = vpop.f32.mrf.mxu0
        %1242 = vdwg.mxu0
        %1244 = vrot.lane.b32.xlu0 %v1238, 24
        %v1245 = vpop.permute.xlu0 %1244
        %vm1247 = vcmask 261312
        %1248 = vst.msk [vmem:[#allocation5] sm:$0xff] %vm1247, %v1245
        %v1249 = vld [vmem:[#allocation5] sm:$0xff]
        %v1250 = vpack.c.bf16 %v1249, %v1249
        %v1251 = vld [vmem:[%s9] sm:$0xf]
        %v1252 = vld [vmem:[%s9 + $0x4] sm:$0xf]
        %v1253 = vld [vmem:[%s9 + $0x8] sm:$0xf]
        %v1254 = vld [vmem:[%s9 + $0xc] sm:$0xf]
        %v1255 = vld [vmem:[%s10] sm:$0x1]
        %v1257 = vlaneseq
        %v1258 = vshrl.u32 %v1257, 7
        %v1259 = vsub.s32 0, %v1258
        %v1260 = vrot.slane %v1255, %v1259
        %v1266 = vunpack.c.l.b16 %v1251
        %v1267 = vunpack.c.l.b16 %v1252
        %v1268 = vunpack.c.l.b16 %v1253
        %v1269 = vunpack.c.l.b16 %v1254
        %v1270 = vpack.c.b16 %v1267, %v1266
        %v1271 = vpack.c.b16 %v1269, %v1268
        %v1275 = vsel %vm581, %v1250, 0
        %1277 = vmatprep.subr.bf16.mxu0 0
        %1278 = vmatpush1.bf16.msra.mxu0 0
        %1279 = vmatprep.subr.bf16.mxu0 0
        %1280 = vmatpush1.bf16.msra.mxu0 0
        %1281 = vmatprep.subr.bf16.mxu0 0
        %1282 = vmatpush1.bf16.msra.mxu0 0
        %1283 = vmatprep.subr.bf16.mxu0 0
        %1284 = vmatpush1.bf16.msra.mxu0 0
        %1285 = vmatprep.subr.bf16.mxu0 0
        %1286 = vmatpush1.bf16.msra.mxu0 0
        %1287 = vmatprep.subr.bf16.mxu0 0
        %1288 = vmatpush1.bf16.msra.mxu0 0
        %1289 = vmatprep.subr.bf16.mxu0 0
        %1290 = vmatpush1.bf16.msra.mxu0 %v1271
        %1291 = vmatprep.subr.bf16.mxu0 0
        %1292 = vmatpush1.bf16.msra.mxu0 %v1270
        %1293 = vmatprep.subr.bf16.mxu0 0
        %1294 = vmatpush2.bf16.msra.mxu0 0
        %1295 = vmatprep.subr.bf16.mxu0 0
        %1296 = vmatpush2.bf16.msra.mxu0 0
        %1297 = vmatprep.subr.bf16.mxu0 0
        %1298 = vmatpush2.bf16.msra.mxu0 0
        %1299 = vmatprep.subr.bf16.mxu0 0
        %1300 = vmatpush2.bf16.msra.mxu0 0
        %1301 = vmatprep.subr.bf16.mxu0 0
        %1302 = vmatpush2.bf16.msra.mxu0 0
        %1303 = vmatprep.subr.bf16.mxu0 0
        %1304 = vmatpush2.bf16.msra.mxu0 0
        %1305 = vmatprep.subr.bf16.mxu0 0
        %1306 = vmatpush2.bf16.msra.mxu0 0
        %1307 = vmatprep.subr.bf16.mxu0 0
        %1308 = vmatpush2.bf16.msra.mxu0 0
        %1309 = vmatprep.mubr.bf16.mxu0 0
        %1310 = vmatmul.mubr.bf16.gmra.mxu0 %v1275
        %v1311 = vpop.f32.mrf.mxu0
        %v1312 = vadd.f32 %v1260, %v1311
        %v1313 = vpop.f32.mrf.mxu0
        %v1314 = vpop.f32.mrf.mxu0
        %v1315 = vpop.f32.mrf.mxu0
        %1316 = vdwg.mxu0
        %1317 = vst.msk [vmem:[%s553] sm:$0xff] %vm581, %v1312
        %s1318 = sand.u32 %s288, 1
        %s1319 = scalar_lea.sflag [#allocation8], %s1318
        %s1320 = sand.u32 %s288, 1
        %s1321 = smul.addr %s1320, 8
        %s1322 = scalar_lea.vmem [#allocation21], %s1321
        // Predicated region
        $region101: #{tpu_custom_call.1} parent=63 // pred_check
          %p1323 = pneg %p298
        $region102: #{tpu_custom_call.1} parent=63 // pred_check_branch
          %1325 = sbr.rel (%p1323) target = $region104
        $region103: #{tpu_custom_call.1} parent=63 // pred_region
          %s1327 = ssub.s32 128, 128
          %1328 = vsyncadd %s1319, %s1327
          %s1329 = smul.addr %s34, 128
          %s1330 = scalar_lea.hbm %s11, %s1329
          %s1332 = sshll.u32 %s1322, 4
          %s1333 = int_to_ptr.vmem [resolvable:$true] %s1332
          %1335 = dma.vmem_to_hbm [thread:$0]  %s1333, 128, %s1330, %s1319
        $region104: #{tpu_custom_call.1} parent=63 // pred_fallthru
          _
      $region64: #{tpu_custom_call.1} parent=5 // pred_fallthru
        _
      %p1336 = scmp.le.s32.totalorder 2, %s29
      // Predicated region
      $region105: #{tpu_custom_call.1} parent=5 // pred_check
        %p1337 = pneg %p1336
      $region106: #{tpu_custom_call.1} parent=5 // pred_check_branch
        %1339 = sbr.rel (%p1337) target = $region108
      $region107: #{tpu_custom_call.1} parent=5 // pred_region
        %s1340 = ssub.s32 %s29, 2
        // Predicated region
        $region109: #{tpu_custom_call.1} parent=107 // pred_check
          %p1341 = pneg %p304
        $region110: #{tpu_custom_call.1} parent=107 // pred_check_branch
          %1343 = sbr.rel (%p1341) target = $region112
        $region111: #{tpu_custom_call.1} parent=107 // pred_region
          %s1344 = sand.u32 %s289, 1
          %s1345 = scalar_lea.sflag [#allocation8], %s1344
          %s1346 = sand.u32 %s289, 1
          %s1347 = smul.addr %s1346, 8
          %s1348 = scalar_lea.vmem [#allocation21], %s1347
          %1349 = dma.done %s1345, 128
        $region112: #{tpu_custom_call.1} parent=107 // pred_fallthru
          _
      $region108: #{tpu_custom_call.1} parent=5 // pred_fallthru
        _
    $region6: #{tpu_custom_call.1} parent=1 // loop_footer
      %s33 = sadd.s32 1, %s29
    $region7: #{tpu_custom_call.1} parent=1 // loop_footer_branch
      %28 = sbr.rel target = $region3
    $region8: #{tpu_custom_call.1} parent=1 // loop_exit
      _
    %1350 = vsyncpa [#allocation7], 1
    %s1351 = scalar_lea.sflag [#allocation7], 1
    %1352 = vsyncpa %s1351, 1
    %1353 = vsyncpa [#allocation10], 1
    %s1354 = scalar_lea.sflag [#allocation10], 1
    %1355 = vsyncpa %s1354, 1
    %1356 = vsyncpa [#allocation13], 1
    %1357 = vsyncpa [#allocation16], 1
    %1358 = vsyncpa [#allocation19], 1
    %1359 = vsyncpa [#allocation8], 1
    %s1360 = scalar_lea.sflag [#allocation8], 1
    %1361 = vsyncpa %s1360, 1

</llo_original>
